<compile_context>
chip_gen: v5e
topology: v5e:2x2
jax: 0.10.0
libtpu: 0.0.40
codegen_flags: <defaults>
</compile_context>

<pallas_src>
import functools

import jax
import jax.numpy as jnp
from jax.experimental import pallas as pl
from jax.experimental.pallas import tpu as pltpu

LANE = 128                     # TPU lane width; activations / GLU halves are lane-dense.
MATMUL_DTYPE = jnp.bfloat16    # MXU-native operand dtype (f32 accumulation).


# ---------------------------------------------------------------------------
# Fused kernel (one grid step = one batch element)
# ---------------------------------------------------------------------------
def convo_fused_kernel(x_ref, w1_ref, b1_ref, w2_ref, b2_ref, w3_ref, b3_ref,
                       lw_ref, lb_ref, eps_ref, out_ref, *, k, pad, f):
    # x_ref  : (1, L, 128)      NLC activation block for this batch element
    # w1_ref : (k, 128, 256)    per-tap conv1 weights ([out | gate] at lanes 0/128)
    # w2_ref : (128, 256)       tap-packed conv2 weights (rows t*f..(t+1)*f = tap t)
    # w3_ref : (128, 256)       tap-packed conv3 weights (rows t*2f..(t+1)*2f = tap t)
    # bN_ref : (1, 256)         lane-dense conv biases
    # lw_ref : (128, 256)       merged [layer1 | layer2] head weight
    # lb_ref : (1, 256)         merged head bias
    # eps_ref: (1, 1, 128)      lane-dense reparametrization noise (zeros past 3F)
    # out_ref: (1, 1, 384)      [out | o1 | o2] at lane offsets 0 / 128 / 256
    x = x_ref[0].astype(jnp.float32)                 # (L, 128)
    L = x.shape[0]

    # Boundary masks for the "same" padding, hoisted (computed once per call).
    row = jax.lax.broadcasted_iota(jnp.int32, (L, LANE), 0)
    masks = {s: (row + s >= 0) & (row + s < L)
             for s in range(-pad, pad + 1) if s != 0}

    def shifted(a, sh):
        # rows: result[l] = a[l + sh], zero outside [0, L).  roll rides the XLU
        # slot; the mask is a cheap VPU select (no unaligned sublane slices).
        if sh == 0:
            return a
        r = pltpu.roll(a, shift=(-sh) % L, axis=0)
        return jnp.where(masks[sh], r, 0.0)

    # ---- conv1 + GLU: k accumulated matmuls over shifted views (Cin = 128) ----
    acc = jnp.zeros((L, 2 * LANE), jnp.float32)
    for t in range(k):
        a_t = shifted(x, t - pad).astype(MATMUL_DTYPE)
        acc = acc + jnp.dot(a_t, w1_ref[t], preferred_element_type=jnp.float32)
    y = acc + b1_ref[...]
    a1 = y[:, :LANE] * jax.nn.sigmoid(y[:, LANE:])   # real channels: [0, f)

    # TODO(synk): Dropout(0.2) here and before conv3 is inference-mode identity.

    # ---- conv2 / conv3 + GLU: tap-packed single matmul each ----
    def packed_conv_glu(a, w_ref_, b_ref_, cin_real):
        # Pack tap t's real channels into lanes [t*cin_real, (t+1)*cin_real):
        # lane roll (XLU) moves the real channels, sublane roll + mask shifts L.
        slab = jnp.zeros((L, LANE), jnp.float32)
        for t in range(k):
            a_l = pltpu.roll(a, shift=t * cin_real, axis=1) if t else a
            slab = slab + shifted(a_l, t - pad)
        yv = jnp.dot(slab.astype(MATMUL_DTYPE), w_ref_[...],
                     preferred_element_type=jnp.float32) + b_ref_[...]
        return yv[:, :LANE] * jax.nn.sigmoid(yv[:, LANE:])

    a2 = packed_conv_glu(a1, w2_ref, b2_ref, f)       # real channels: 2f
    a3 = packed_conv_glu(a2, w3_ref, b3_ref, 2 * f)   # real channels: 3f

    # ---- AdaptiveAvgPool1d(1) + squeeze: mean over L (sublane reduce) ----
    pooled = jnp.mean(a3, axis=0, keepdims=True)      # (1, 128)

    # ---- merged heads: one matmul, split at lane 128 ----
    yh = jnp.dot(pooled.astype(MATMUL_DTYPE), lw_ref[...],
                 preferred_element_type=jnp.float32) + lb_ref[...]   # (1, 256)
    o1 = jnp.maximum(yh[:, :LANE], 0.0)               # layer1: Linear + ReLU (mean)
    o2 = jnp.maximum(yh[:, LANE:], 0.0)               # layer2: Linear + ReLU (logvar)
    std = jnp.exp(0.5 * o2)                           # logvar.mul(0.5).exp_()
    out = eps_ref[0] * std + o1                       # eps.mul(std).add_(mean)

    # Single lane-dense writeback: [out | o1 | o2] at lane offsets 0/128/256.
    out_ref[0] = jnp.concatenate([out, o1, o2], axis=1).astype(out_ref.dtype)


# ---------------------------------------------------------------------------
# Parameter construction & one-time prep into the kernel's lane-dense layout
# ---------------------------------------------------------------------------
def init_params(key, num_filters, k_size, in_channels=128):
    # Conv weights stored as (k, Cin, Cout)  (PyTorch (Cout, Cin, k) -> transpose(2,1,0))
    # Linear weights stored as (In, Out)     (PyTorch (Out, In)      -> transpose)
    F = num_filters
    keys = jax.random.split(key, 10)

    def conv_w(kk, cin, cout):
        return 0.05 * jax.random.normal(kk, (k_size, cin, cout), jnp.float32)

    def lin_w(kk, cin, cout):
        return 0.05 * jax.random.normal(kk, (cin, cout), jnp.float32)

    return {
        "w1": conv_w(keys[0], in_channels, 2 * F),
        "b1": 0.01 * jax.random.normal(keys[1], (2 * F,), jnp.float32),
        "w2": conv_w(keys[2], F, 4 * F),
        "b2": 0.01 * jax.random.normal(keys[3], (4 * F,), jnp.float32),
        "w3": conv_w(keys[4], 2 * F, 6 * F),
        "b3": 0.01 * jax.random.normal(keys[5], (6 * F,), jnp.float32),
        "lw1": lin_w(keys[6], 3 * F, 3 * F),
        "lb1": 0.01 * jax.random.normal(keys[7], (3 * F,), jnp.float32),
        "lw2": lin_w(keys[8], 3 * F, 3 * F),
        "lb2": 0.01 * jax.random.normal(keys[9], (3 * F,), jnp.float32),
    }


def prepare_params(p):
    """One-time host-side prep: lane-dense, tap-packed, bf16 matmul weights.

    GLU layout: "out" output channels at columns [0, half), "gate" channels at
    columns [128, 128 + half); all other columns (weights AND biases) are zero
    so the padded lanes stay exactly zero after out * sigmoid(gate).
    """
    def glu_bias(b, half):
        bp = jnp.zeros((1, 2 * LANE), jnp.float32)
        return bp.at[0, :half].set(b[:half]).at[0, LANE:LANE + half].set(b[half:])

    def conv1_per_tap(w, b):
        k, cin, cout = w.shape
        half = cout // 2
        assert cin <= LANE and half <= LANE
        wp = jnp.zeros((k, LANE, 2 * LANE), jnp.float32)
        wp = wp.at[:, :cin, :half].set(w[:, :, :half])
        wp = wp.at[:, :cin, LANE:LANE + half].set(w[:, :, half:])
        return wp.astype(MATMUL_DTYPE), glu_bias(b, half)

    def conv_tap_packed(w, b):
        k, cin, cout = w.shape
        half = cout // 2
        assert k * cin <= LANE and half <= LANE, "tap packing needs k*Cin <= 128"
        wp = jnp.zeros((LANE, 2 * LANE), jnp.float32)
        for t in range(k):
            wp = wp.at[t * cin:(t + 1) * cin, :half].set(w[t, :, :half])
            wp = wp.at[t * cin:(t + 1) * cin, LANE:LANE + half].set(w[t, :, half:])
        return wp.astype(MATMUL_DTYPE), glu_bias(b, half)

    def head_pack(w1, b1, w2, b2):
        f3 = w1.shape[0]
        assert f3 <= LANE
        wp = jnp.zeros((LANE, 2 * LANE), jnp.float32)
        wp = wp.at[:f3, :f3].set(w1).at[:f3, LANE:LANE + f3].set(w2)
        bp = jnp.zeros((1, 2 * LANE), jnp.float32)
        bp = bp.at[0, :f3].set(b1).at[0, LANE:LANE + f3].set(b2)
        return wp.astype(MATMUL_DTYPE), bp

    w1, b1 = conv1_per_tap(p["w1"], p["b1"])
    w2, b2 = conv_tap_packed(p["w2"], p["b2"])
    w3, b3 = conv_tap_packed(p["w3"], p["b3"])
    lw, lb = head_pack(p["lw1"], p["lb1"], p["lw2"], p["lb2"])
    return {"w1": w1, "b1": b1, "w2": w2, "b2": b2, "w3": w3, "b3": b3,
            "lw": lw, "lb": lb}


# ---------------------------------------------------------------------------
# Wrapper
# ---------------------------------------------------------------------------
@functools.partial(jax.jit, static_argnums=(3, 4))
def convo_forward(x_ncl, prep, eps, num_filters, k_size):
    """x_ncl: (B, 128, L) NCL; eps: (B, 3F).  Returns (out, o1, o2), each (B, 3F)."""
    if k_size % 2 != 1:
        raise ValueError("k_size must be odd (PyTorch padding=k//2 'same' length)")
    if x_ncl.shape[1] != LANE:
        raise ValueError("Convo expects 128 input channels")
    B, _, L = x_ncl.shape
    f3 = 3 * num_filters

    # NCL -> NLC in the wrapper (layout plumbing stays out of the kernel).
    x_nlc = jnp.transpose(x_ncl, (0, 2, 1)).astype(jnp.float32)
    # Lane-dense noise: real values in lanes [0, 3F), zeros elsewhere.
    eps_pad = jnp.zeros((B, 1, LANE), jnp.float32).at[:, 0, :f3].set(eps)

    kern = functools.partial(convo_fused_kernel,
                             k=k_size, pad=k_size // 2, f=num_filters)
    const = lambda shape: pl.BlockSpec(shape, lambda b: (0,) * len(shape))

    res = pl.pallas_call(
        kern,
        out_shape=jax.ShapeDtypeStruct((B, 1, 3 * LANE), jnp.float32),
        grid=(B,),
        in_specs=[
            pl.BlockSpec((1, L, LANE), lambda b: (b, 0, 0)),          # x (per batch)
            const((k_size, LANE, 2 * LANE)),                          # w1 (resident)
            const((1, 2 * LANE)),                                     # b1
            const((LANE, 2 * LANE)),                                  # w2
            const((1, 2 * LANE)),                                     # b2
            const((LANE, 2 * LANE)),                                  # w3
            const((1, 2 * LANE)),                                     # b3
            const((LANE, 2 * LANE)),                                  # lw
            const((1, 2 * LANE)),                                     # lb
            pl.BlockSpec((1, 1, LANE), lambda b: (b, 0, 0)),          # eps (per batch)
        ],
        out_specs=pl.BlockSpec((1, 1, 3 * LANE), lambda b: (b, 0, 0)),
        compiler_params=pltpu.CompilerParams(
            dimension_semantics=("parallel",),       # both TCs on v7x
            vmem_limit_bytes=32 * 1024 * 1024,       # well under v7x's 64 MiB
        ),
    )(x_nlc, prep["w1"], prep["b1"], prep["w2"], prep["b2"],
      prep["w3"], prep["b3"], prep["lw"], prep["lb"], eps_pad)

    res = res.reshape(B, 3 * LANE)
    out = res[:, :f3]
    o1 = res[:, LANE:LANE + f3]
    o2 = res[:, 2 * LANE:2 * LANE + f3]
    return out, o1, o2


if __name__ == "__main__":
    num_filters = 8
    k_size = 3
    B, C_in, L = 2, 128, 16

    root = jax.random.PRNGKey(0)
    k_x, k_eps, k_p = jax.random.split(root, 3)

    x = jax.random.normal(k_x, (B, C_in, L), jnp.float32)
    # eps ~ N(0, std=0.1): torch normal_(0, 0.1) takes std, so scale by 0.1.
    eps = 0.1 * jax.random.normal(k_eps, (B, 3 * num_filters), jnp.float32)

    params = init_params(k_p, num_filters, k_size, in_channels=C_in)
    prep = prepare_params(params)

    out, o1, o2 = convo_forward(x, prep, eps, num_filters, k_size)
    jax.block_until_ready((out, o1, o2))

    assert out.shape == (B, 3 * num_filters)
    assert o1.shape == (B, 3 * num_filters)
    assert o2.shape == (B, 3 * num_filters)
    assert bool(jnp.all(jnp.isfinite(out)))
    assert bool(jnp.all(o1 >= 0.0)) and bool(jnp.all(o2 >= 0.0))
    print("KERNEL_OK")
</pallas_src>

<mosaic_0001>
module attributes {stable_mosaic.version = 11 : i64} {
  func.func @convo_fused_kernel(%arg0: i32, %arg1: memref<1x16x128xf32, #tpu.memory_space<vmem>>, %arg2: memref<3x128x256xbf16, #tpu.memory_space<vmem>>, %arg3: memref<1x256xf32, #tpu.memory_space<vmem>>, %arg4: memref<128x256xbf16, #tpu.memory_space<vmem>>, %arg5: memref<1x256xf32, #tpu.memory_space<vmem>>, %arg6: memref<128x256xbf16, #tpu.memory_space<vmem>>, %arg7: memref<1x256xf32, #tpu.memory_space<vmem>>, %arg8: memref<128x256xbf16, #tpu.memory_space<vmem>>, %arg9: memref<1x256xf32, #tpu.memory_space<vmem>>, %arg10: memref<1x1x128xf32, #tpu.memory_space<vmem>>, %arg11: memref<1x1x384xf32, #tpu.memory_space<vmem>>) attributes {dimension_semantics = [#tpu.dimension_semantics<parallel>], iteration_bounds = array<i64: 2>, scalar_prefetch = 0 : i64, scratch_operands = 0 : i64, tpu.core_type = #tpu.core_type<tc>, window_params = [{transform_indices = @transform_0, window_bounds = array<i64: 1, 16, 128>}, {pipeline_mode = #tpu.pipeline_mode<synchronous>, transform_indices = @transform_1, window_bounds = array<i64: 3, 128, 256>}, {pipeline_mode = #tpu.pipeline_mode<synchronous>, transform_indices = @transform_2, window_bounds = array<i64: 1, 256>}, {pipeline_mode = #tpu.pipeline_mode<synchronous>, transform_indices = @transform_3, window_bounds = array<i64: 128, 256>}, {pipeline_mode = #tpu.pipeline_mode<synchronous>, transform_indices = @transform_4, window_bounds = array<i64: 1, 256>}, {pipeline_mode = #tpu.pipeline_mode<synchronous>, transform_indices = @transform_5, window_bounds = array<i64: 128, 256>}, {pipeline_mode = #tpu.pipeline_mode<synchronous>, transform_indices = @transform_6, window_bounds = array<i64: 1, 256>}, {pipeline_mode = #tpu.pipeline_mode<synchronous>, transform_indices = @transform_7, window_bounds = array<i64: 128, 256>}, {pipeline_mode = #tpu.pipeline_mode<synchronous>, transform_indices = @transform_8, window_bounds = array<i64: 1, 256>}, {transform_indices = @transform_9, window_bounds = array<i64: 1, 1, 128>}, {transform_indices = @transform_10, window_bounds = array<i64: 1, 1, 384>}]} {
    %c0 = arith.constant 0 : index
    %c0_0 = arith.constant 0 : index
    %c0_1 = arith.constant 0 : index
    %0 = vector.load %arg1[%c0, %c0_0, %c0_1] : memref<1x16x128xf32, #tpu.memory_space<vmem>>, vector<1x16x128xf32>
    %1 = vector.shape_cast %0 : vector<1x16x128xf32> to vector<16x128xf32>
    %2 = tpu.iota {dimensions = array<i32: 0>} : vector<16x128xi32>
    %c-1_i32 = arith.constant -1 : i32
    %3 = vector.broadcast %c-1_i32 : i32 to vector<16x128xi32>
    %4 = arith.addi %2, %3 : vector<16x128xi32>
    %c0_i32 = arith.constant 0 : i32
    %5 = vector.broadcast %c0_i32 : i32 to vector<16x128xi32>
    %6 = arith.cmpi sge, %4, %5 : vector<16x128xi32>
    %c-1_i32_2 = arith.constant -1 : i32
    %7 = vector.broadcast %c-1_i32_2 : i32 to vector<16x128xi32>
    %8 = arith.addi %2, %7 : vector<16x128xi32>
    %c16_i32 = arith.constant 16 : i32
    %9 = vector.broadcast %c16_i32 : i32 to vector<16x128xi32>
    %10 = arith.cmpi slt, %8, %9 : vector<16x128xi32>
    %11 = arith.andi %6, %10 : vector<16x128xi1>
    %c1_i32 = arith.constant 1 : i32
    %12 = vector.broadcast %c1_i32 : i32 to vector<16x128xi32>
    %13 = arith.addi %2, %12 : vector<16x128xi32>
    %c0_i32_3 = arith.constant 0 : i32
    %14 = vector.broadcast %c0_i32_3 : i32 to vector<16x128xi32>
    %15 = arith.cmpi sge, %13, %14 : vector<16x128xi32>
    %c1_i32_4 = arith.constant 1 : i32
    %16 = vector.broadcast %c1_i32_4 : i32 to vector<16x128xi32>
    %17 = arith.addi %2, %16 : vector<16x128xi32>
    %c16_i32_5 = arith.constant 16 : i32
    %18 = vector.broadcast %c16_i32_5 : i32 to vector<16x128xi32>
    %19 = arith.cmpi slt, %17, %18 : vector<16x128xi32>
    %20 = arith.andi %15, %19 : vector<16x128xi1>
    %cst = arith.constant 0.000000e+00 : f32
    %21 = vector.broadcast %cst : f32 to vector<16x256xf32>
    %c1_i32_6 = arith.constant 1 : i32
    %22 = tpu.dynamic_rotate %1 by %c1_i32_6 dim 0 : vector<16x128xf32>, i32 -> vector<16x128xf32>
    %cst_7 = arith.constant 0.000000e+00 : f32
    %23 = vector.broadcast %cst_7 : f32 to vector<16x128xf32>
    %24 = arith.select %11, %22, %23 : vector<16x128xi1>, vector<16x128xf32>
    %25 = arith.truncf %24 : vector<16x128xf32> to vector<16x128xbf16>
    %c0_8 = arith.constant 0 : index
    %c0_9 = arith.constant 0 : index
    %c0_10 = arith.constant 0 : index
    %26 = vector.load %arg2[%c0_8, %c0_9, %c0_10] : memref<3x128x256xbf16, #tpu.memory_space<vmem>>, vector<1x128x256xbf16>
    %27 = vector.shape_cast %26 : vector<1x128x256xbf16> to vector<128x256xbf16>
    %cst_11 = arith.constant dense<0.000000e+00> : vector<16x256xf32>
    %28 = tpu.matmul %25, %27, %cst_11 {dimension_numbers = #tpu.dot_dimension_numbers<[1], [0], [0], [1], [0, 0, 1, 1], [], []>} : vector<16x128xbf16>, vector<128x256xbf16>, vector<16x256xf32> -> vector<16x256xf32>
    %29 = arith.addf %21, %28 : vector<16x256xf32>
    %30 = arith.truncf %1 : vector<16x128xf32> to vector<16x128xbf16>
    %c1 = arith.constant 1 : index
    %c0_12 = arith.constant 0 : index
    %c0_13 = arith.constant 0 : index
    %31 = vector.load %arg2[%c1, %c0_12, %c0_13] : memref<3x128x256xbf16, #tpu.memory_space<vmem>>, vector<1x128x256xbf16>
    %32 = vector.shape_cast %31 : vector<1x128x256xbf16> to vector<128x256xbf16>
    %cst_14 = arith.constant dense<0.000000e+00> : vector<16x256xf32>
    %33 = tpu.matmul %30, %32, %cst_14 {dimension_numbers = #tpu.dot_dimension_numbers<[1], [0], [0], [1], [0, 0, 1, 1], [], []>} : vector<16x128xbf16>, vector<128x256xbf16>, vector<16x256xf32> -> vector<16x256xf32>
    %34 = arith.addf %29, %33 : vector<16x256xf32>
    %c15_i32 = arith.constant 15 : i32
    %35 = tpu.dynamic_rotate %1 by %c15_i32 dim 0 : vector<16x128xf32>, i32 -> vector<16x128xf32>
    %cst_15 = arith.constant 0.000000e+00 : f32
    %36 = vector.broadcast %cst_15 : f32 to vector<16x128xf32>
    %37 = arith.select %20, %35, %36 : vector<16x128xi1>, vector<16x128xf32>
    %38 = arith.truncf %37 : vector<16x128xf32> to vector<16x128xbf16>
    %c2 = arith.constant 2 : index
    %c0_16 = arith.constant 0 : index
    %c0_17 = arith.constant 0 : index
    %39 = vector.load %arg2[%c2, %c0_16, %c0_17] : memref<3x128x256xbf16, #tpu.memory_space<vmem>>, vector<1x128x256xbf16>
    %40 = vector.shape_cast %39 : vector<1x128x256xbf16> to vector<128x256xbf16>
    %cst_18 = arith.constant dense<0.000000e+00> : vector<16x256xf32>
    %41 = tpu.matmul %38, %40, %cst_18 {dimension_numbers = #tpu.dot_dimension_numbers<[1], [0], [0], [1], [0, 0, 1, 1], [], []>} : vector<16x128xbf16>, vector<128x256xbf16>, vector<16x256xf32> -> vector<16x256xf32>
    %42 = arith.addf %34, %41 : vector<16x256xf32>
    %c0_19 = arith.constant 0 : index
    %c0_20 = arith.constant 0 : index
    %43 = vector.load %arg3[%c0_19, %c0_20] : memref<1x256xf32, #tpu.memory_space<vmem>>, vector<1x256xf32>
    %44 = vector.broadcast %43 : vector<1x256xf32> to vector<16x256xf32>
    %45 = arith.addf %42, %44 : vector<16x256xf32>
    %46 = vector.extract_strided_slice %45 {offsets = [0, 0], sizes = [16, 128], strides = [1, 1]} : vector<16x256xf32> to vector<16x128xf32>
    %47 = vector.extract_strided_slice %45 {offsets = [0, 128], sizes = [16, 128], strides = [1, 1]} : vector<16x256xf32> to vector<16x128xf32>
    %48 = arith.negf %47 : vector<16x128xf32>
    %49 = math.exp %48 : vector<16x128xf32>
    %cst_21 = arith.constant 1.000000e+00 : f32
    %50 = vector.broadcast %cst_21 : f32 to vector<16x128xf32>
    %51 = arith.addf %50, %49 : vector<16x128xf32>
    %52 = arith.divf %50, %51 : vector<16x128xf32>
    %53 = arith.mulf %46, %52 : vector<16x128xf32>
    %cst_22 = arith.constant 0.000000e+00 : f32
    %54 = vector.broadcast %cst_22 : f32 to vector<16x128xf32>
    %c1_i32_23 = arith.constant 1 : i32
    %55 = tpu.dynamic_rotate %53 by %c1_i32_23 dim 0 : vector<16x128xf32>, i32 -> vector<16x128xf32>
    %cst_24 = arith.constant 0.000000e+00 : f32
    %56 = vector.broadcast %cst_24 : f32 to vector<16x128xf32>
    %57 = arith.select %11, %55, %56 : vector<16x128xi1>, vector<16x128xf32>
    %58 = arith.addf %54, %57 : vector<16x128xf32>
    %c8_i32 = arith.constant 8 : i32
    %59 = tpu.dynamic_rotate %53 by %c8_i32 dim 1 : vector<16x128xf32>, i32 -> vector<16x128xf32>
    %60 = arith.addf %58, %59 : vector<16x128xf32>
    %c16_i32_25 = arith.constant 16 : i32
    %61 = tpu.dynamic_rotate %53 by %c16_i32_25 dim 1 : vector<16x128xf32>, i32 -> vector<16x128xf32>
    %c15_i32_26 = arith.constant 15 : i32
    %62 = tpu.dynamic_rotate %61 by %c15_i32_26 dim 0 : vector<16x128xf32>, i32 -> vector<16x128xf32>
    %cst_27 = arith.constant 0.000000e+00 : f32
    %63 = vector.broadcast %cst_27 : f32 to vector<16x128xf32>
    %64 = arith.select %20, %62, %63 : vector<16x128xi1>, vector<16x128xf32>
    %65 = arith.addf %60, %64 : vector<16x128xf32>
    %66 = arith.truncf %65 : vector<16x128xf32> to vector<16x128xbf16>
    %c0_28 = arith.constant 0 : index
    %c0_29 = arith.constant 0 : index
    %67 = vector.load %arg4[%c0_28, %c0_29] : memref<128x256xbf16, #tpu.memory_space<vmem>>, vector<128x256xbf16>
    %cst_30 = arith.constant dense<0.000000e+00> : vector<16x256xf32>
    %68 = tpu.matmul %66, %67, %cst_30 {dimension_numbers = #tpu.dot_dimension_numbers<[1], [0], [0], [1], [0, 0, 1, 1], [], []>} : vector<16x128xbf16>, vector<128x256xbf16>, vector<16x256xf32> -> vector<16x256xf32>
    %c0_31 = arith.constant 0 : index
    %c0_32 = arith.constant 0 : index
    %69 = vector.load %arg5[%c0_31, %c0_32] : memref<1x256xf32, #tpu.memory_space<vmem>>, vector<1x256xf32>
    %70 = vector.broadcast %69 : vector<1x256xf32> to vector<16x256xf32>
    %71 = arith.addf %68, %70 : vector<16x256xf32>
    %72 = vector.extract_strided_slice %71 {offsets = [0, 0], sizes = [16, 128], strides = [1, 1]} : vector<16x256xf32> to vector<16x128xf32>
    %73 = vector.extract_strided_slice %71 {offsets = [0, 128], sizes = [16, 128], strides = [1, 1]} : vector<16x256xf32> to vector<16x128xf32>
    %74 = arith.negf %73 : vector<16x128xf32>
    %75 = math.exp %74 : vector<16x128xf32>
    %cst_33 = arith.constant 1.000000e+00 : f32
    %76 = vector.broadcast %cst_33 : f32 to vector<16x128xf32>
    %77 = arith.addf %76, %75 : vector<16x128xf32>
    %78 = arith.divf %76, %77 : vector<16x128xf32>
    %79 = arith.mulf %72, %78 : vector<16x128xf32>
    %cst_34 = arith.constant 0.000000e+00 : f32
    %80 = vector.broadcast %cst_34 : f32 to vector<16x128xf32>
    %c1_i32_35 = arith.constant 1 : i32
    %81 = tpu.dynamic_rotate %79 by %c1_i32_35 dim 0 : vector<16x128xf32>, i32 -> vector<16x128xf32>
    %cst_36 = arith.constant 0.000000e+00 : f32
    %82 = vector.broadcast %cst_36 : f32 to vector<16x128xf32>
    %83 = arith.select %11, %81, %82 : vector<16x128xi1>, vector<16x128xf32>
    %84 = arith.addf %80, %83 : vector<16x128xf32>
    %c16_i32_37 = arith.constant 16 : i32
    %85 = tpu.dynamic_rotate %79 by %c16_i32_37 dim 1 : vector<16x128xf32>, i32 -> vector<16x128xf32>
    %86 = arith.addf %84, %85 : vector<16x128xf32>
    %c32_i32 = arith.constant 32 : i32
    %87 = tpu.dynamic_rotate %79 by %c32_i32 dim 1 : vector<16x128xf32>, i32 -> vector<16x128xf32>
    %c15_i32_38 = arith.constant 15 : i32
    %88 = tpu.dynamic_rotate %87 by %c15_i32_38 dim 0 : vector<16x128xf32>, i32 -> vector<16x128xf32>
    %cst_39 = arith.constant 0.000000e+00 : f32
    %89 = vector.broadcast %cst_39 : f32 to vector<16x128xf32>
    %90 = arith.select %20, %88, %89 : vector<16x128xi1>, vector<16x128xf32>
    %91 = arith.addf %86, %90 : vector<16x128xf32>
    %92 = arith.truncf %91 : vector<16x128xf32> to vector<16x128xbf16>
    %c0_40 = arith.constant 0 : index
    %c0_41 = arith.constant 0 : index
    %93 = vector.load %arg6[%c0_40, %c0_41] : memref<128x256xbf16, #tpu.memory_space<vmem>>, vector<128x256xbf16>
    %cst_42 = arith.constant dense<0.000000e+00> : vector<16x256xf32>
    %94 = tpu.matmul %92, %93, %cst_42 {dimension_numbers = #tpu.dot_dimension_numbers<[1], [0], [0], [1], [0, 0, 1, 1], [], []>} : vector<16x128xbf16>, vector<128x256xbf16>, vector<16x256xf32> -> vector<16x256xf32>
    %c0_43 = arith.constant 0 : index
    %c0_44 = arith.constant 0 : index
    %95 = vector.load %arg7[%c0_43, %c0_44] : memref<1x256xf32, #tpu.memory_space<vmem>>, vector<1x256xf32>
    %96 = vector.broadcast %95 : vector<1x256xf32> to vector<16x256xf32>
    %97 = arith.addf %94, %96 : vector<16x256xf32>
    %98 = vector.extract_strided_slice %97 {offsets = [0, 0], sizes = [16, 128], strides = [1, 1]} : vector<16x256xf32> to vector<16x128xf32>
    %99 = vector.extract_strided_slice %97 {offsets = [0, 128], sizes = [16, 128], strides = [1, 1]} : vector<16x256xf32> to vector<16x128xf32>
    %100 = arith.negf %99 : vector<16x128xf32>
    %101 = math.exp %100 : vector<16x128xf32>
    %cst_45 = arith.constant 1.000000e+00 : f32
    %102 = vector.broadcast %cst_45 : f32 to vector<16x128xf32>
    %103 = arith.addf %102, %101 : vector<16x128xf32>
    %104 = arith.divf %102, %103 : vector<16x128xf32>
    %105 = arith.mulf %98, %104 : vector<16x128xf32>
    %cst_46 = arith.constant dense<0.000000e+00> : vector<128xf32>
    %106 = vector.multi_reduction <add>, %105, %cst_46 [0] : vector<16x128xf32> to vector<128xf32>
    %107 = vector.shape_cast %106 : vector<128xf32> to vector<1x128xf32>
    %cst_47 = arith.constant 1.600000e+01 : f32
    %108 = vector.broadcast %cst_47 : f32 to vector<1x128xf32>
    %109 = arith.divf %107, %108 : vector<1x128xf32>
    %110 = arith.truncf %109 : vector<1x128xf32> to vector<1x128xbf16>
    %c0_48 = arith.constant 0 : index
    %c0_49 = arith.constant 0 : index
    %111 = vector.load %arg8[%c0_48, %c0_49] : memref<128x256xbf16, #tpu.memory_space<vmem>>, vector<128x256xbf16>
    %cst_50 = arith.constant dense<0.000000e+00> : vector<1x256xf32>
    %112 = tpu.matmul %110, %111, %cst_50 {dimension_numbers = #tpu.dot_dimension_numbers<[1], [0], [0], [1], [0, 0, 1, 1], [], []>} : vector<1x128xbf16>, vector<128x256xbf16>, vector<1x256xf32> -> vector<1x256xf32>
    %c0_51 = arith.constant 0 : index
    %c0_52 = arith.constant 0 : index
    %113 = vector.load %arg9[%c0_51, %c0_52] : memref<1x256xf32, #tpu.memory_space<vmem>>, vector<1x256xf32>
    %114 = arith.addf %112, %113 : vector<1x256xf32>
    %115 = vector.extract_strided_slice %114 {offsets = [0, 0], sizes = [1, 128], strides = [1, 1]} : vector<1x256xf32> to vector<1x128xf32>
    %cst_53 = arith.constant 0.000000e+00 : f32
    %116 = vector.broadcast %cst_53 : f32 to vector<1x128xf32>
    %117 = arith.maximumf %115, %116 : vector<1x128xf32>
    %118 = vector.extract_strided_slice %114 {offsets = [0, 128], sizes = [1, 128], strides = [1, 1]} : vector<1x256xf32> to vector<1x128xf32>
    %cst_54 = arith.constant 0.000000e+00 : f32
    %119 = vector.broadcast %cst_54 : f32 to vector<1x128xf32>
    %120 = arith.maximumf %118, %119 : vector<1x128xf32>
    %cst_55 = arith.constant 5.000000e-01 : f32
    %121 = vector.broadcast %cst_55 : f32 to vector<1x128xf32>
    %122 = arith.mulf %121, %120 : vector<1x128xf32>
    %123 = math.exp %122 : vector<1x128xf32>
    %c0_56 = arith.constant 0 : index
    %c0_57 = arith.constant 0 : index
    %c0_58 = arith.constant 0 : index
    %124 = vector.load %arg10[%c0_56, %c0_57, %c0_58] : memref<1x1x128xf32, #tpu.memory_space<vmem>>, vector<1x1x128xf32>
    %125 = vector.shape_cast %124 : vector<1x1x128xf32> to vector<1x128xf32>
    %126 = arith.mulf %125, %123 : vector<1x128xf32>
    %127 = arith.addf %126, %117 : vector<1x128xf32>
    %128 = tpu.concatenate %127, %117, %120 in 1 : vector<1x128xf32>, vector<1x128xf32>, vector<1x128xf32> -> vector<1x384xf32>
    %c0_59 = arith.constant 0 : index
    %c0_60 = arith.constant 0 : index
    %c0_61 = arith.constant 0 : index
    %129 = vector.load %arg11[%c0_59, %c0_60, %c0_61] : memref<1x1x384xf32, #tpu.memory_space<vmem>>, vector<1x1x384xf32>
    %130 = vector.shape_cast %129 : vector<1x1x384xf32> to vector<1x384xf32>
    %131 = vector.shape_cast %128 : vector<1x384xf32> to vector<1x1x384xf32>
    tpu.vector_store %arg11[%c0_59, %c0_60, %c0_61], %131 {strides = array<i32>} : memref<1x1x384xf32, #tpu.memory_space<vmem>>, vector<1x1x384xf32>,
    return
  }
  func.func @transform_0(%arg0: i32) -> (i32, i32, i32) {
    %c0_i32 = arith.constant 0 : i32
    %c0_i32_0 = arith.constant 0 : i32
    %c0_i32_1 = arith.constant 0 : i32
    return %arg0, %c0_i32, %c0_i32_0 : i32, i32, i32
  }
  func.func @transform_1(%arg0: i32) -> (i32, i32, i32) {
    %c0_i32 = arith.constant 0 : i32
    %c0_i32_0 = arith.constant 0 : i32
    %c0_i32_1 = arith.constant 0 : i32
    %c0_i32_2 = arith.constant 0 : i32
    return %c0_i32, %c0_i32_0, %c0_i32_1 : i32, i32, i32
  }
  func.func @transform_2(%arg0: i32) -> (i32, i32) {
    %c0_i32 = arith.constant 0 : i32
    %c0_i32_0 = arith.constant 0 : i32
    %c0_i32_1 = arith.constant 0 : i32
    return %c0_i32, %c0_i32_0 : i32, i32
  }
  func.func @transform_3(%arg0: i32) -> (i32, i32) {
    %c0_i32 = arith.constant 0 : i32
    %c0_i32_0 = arith.constant 0 : i32
    %c0_i32_1 = arith.constant 0 : i32
    return %c0_i32, %c0_i32_0 : i32, i32
  }
  func.func @transform_4(%arg0: i32) -> (i32, i32) {
    %c0_i32 = arith.constant 0 : i32
    %c0_i32_0 = arith.constant 0 : i32
    %c0_i32_1 = arith.constant 0 : i32
    return %c0_i32, %c0_i32_0 : i32, i32
  }
  func.func @transform_5(%arg0: i32) -> (i32, i32) {
    %c0_i32 = arith.constant 0 : i32
    %c0_i32_0 = arith.constant 0 : i32
    %c0_i32_1 = arith.constant 0 : i32
    return %c0_i32, %c0_i32_0 : i32, i32
  }
  func.func @transform_6(%arg0: i32) -> (i32, i32) {
    %c0_i32 = arith.constant 0 : i32
    %c0_i32_0 = arith.constant 0 : i32
    %c0_i32_1 = arith.constant 0 : i32
    return %c0_i32, %c0_i32_0 : i32, i32
  }
  func.func @transform_7(%arg0: i32) -> (i32, i32) {
    %c0_i32 = arith.constant 0 : i32
    %c0_i32_0 = arith.constant 0 : i32
    %c0_i32_1 = arith.constant 0 : i32
    return %c0_i32, %c0_i32_0 : i32, i32
  }
  func.func @transform_8(%arg0: i32) -> (i32, i32) {
    %c0_i32 = arith.constant 0 : i32
    %c0_i32_0 = arith.constant 0 : i32
    %c0_i32_1 = arith.constant 0 : i32
    return %c0_i32, %c0_i32_0 : i32, i32
  }
  func.func @transform_9(%arg0: i32) -> (i32, i32, i32) {
    %c0_i32 = arith.constant 0 : i32
    %c0_i32_0 = arith.constant 0 : i32
    %c0_i32_1 = arith.constant 0 : i32
    return %arg0, %c0_i32, %c0_i32_0 : i32, i32, i32
  }
  func.func @transform_10(%arg0: i32) -> (i32, i32, i32) {
    %c0_i32 = arith.constant 0 : i32
    %c0_i32_0 = arith.constant 0 : i32
    %c0_i32_1 = arith.constant 0 : i32
    return %arg0, %c0_i32, %c0_i32_0 : i32, i32, i32
  }
}

</mosaic_0001>

<llo_original>
// kernel: convo_forward.1
$region0: #{convo_forward.1}
  #allocation0 [shape = 'u32[]', space=smem, size = 0x4, offset = 0x4, fixed_abs, tag = 'smem constant byte address 0x4 - core index']
  #allocation1 [shape = 'u32[72,128]{1,0:T(1,128)}', space=vmem, size = 0x9000, scoped, tag = 'internal scratch']
  %s0 = inlined_call_operand.hbm [shape: f32[2,16,128], index: 0, kind: input, shape index: {}]
  %s1 = inlined_call_operand.hbm [shape: bf16[3,128,256], index: 1, kind: input, shape index: {}]
  %s2 = inlined_call_operand.vmem [shape: f32[1,256], index: 2, kind: input, shape index: {}]
  %s3 = inlined_call_operand.hbm [shape: bf16[128,256], index: 3, kind: input, shape index: {}]
  %s4 = inlined_call_operand.vmem [shape: f32[1,256], index: 4, kind: input, shape index: {}]
  %s5 = inlined_call_operand.hbm [shape: bf16[128,256], index: 5, kind: input, shape index: {}]
  %s6 = inlined_call_operand.vmem [shape: f32[1,256], index: 6, kind: input, shape index: {}]
  %s7 = inlined_call_operand.hbm [shape: bf16[128,256], index: 7, kind: input, shape index: {}]
  %s8 = inlined_call_operand.vmem [shape: f32[1,256], index: 8, kind: input, shape index: {}]
  %s9 = inlined_call_operand.vmem [shape: f32[2,1,128], index: 9, kind: input, shape index: {}]
  %s10 = inlined_call_operand.vmem [shape: f32[2,1,384], index: 10, kind: output, shape index: {}]
  %s11 = sld [smem:[#allocation0]]
  $region93: #{convo_forward.1} parent=0
    _
  %s13 = ssub.s32 1, %s11
  %s14 = scalar_select 0, %s13, %s11
  $region1: #{convo_forward.1} parent=0
    #allocation2 [shape = 'u8[16384]{0}', space=vmem, size = 0x4000, scoped, tag = 'input window, operand 0']
    #allocation3 [shape = 's32[2]{0}', space=sflag, size = 0x8, scoped, tag = 'scoped memory for convo_forward.1']
    #allocation4 [shape = 'u8[196608]{0}', space=vmem, size = 0x30000, scoped, tag = 'input window, operand 1, single buffered']
    #allocation5 [shape = 's32[1]{0}', space=sflag, size = 0x4, scoped, tag = 'scoped memory for convo_forward.1']
    #allocation6 [shape = 'u8[65536]{0}', space=vmem, size = 0x10000, scoped, tag = 'input window, operand 3, single buffered']
    #allocation7 [shape = 'u8[65536]{0}', space=vmem, size = 0x10000, scoped, tag = 'input window, operand 5, single buffered']
    #allocation8 [shape = 's32[1]{0}', space=sflag, size = 0x4, scoped, tag = 'scoped memory for convo_forward.1']
    #allocation9 [shape = 'u8[65536]{0}', space=vmem, size = 0x10000, scoped, tag = 'input window, operand 7, single buffered']
    %15 = vsyncpa [#allocation3], 0
    %s16 = scalar_lea.sflag [#allocation3], 1
    %17 = vsyncpa %s16, 0
    %18 = vsyncpa [#allocation5], 0
    %19 = vsyncpa [#allocation8], 0
    loop: start=0, step=1, limit=4
    $region2: #{convo_forward.1} parent=1 // loop_pre_header
      _
    $region3: #{convo_forward.1} parent=1 // loop_header
      %s21 = sphi 0, %s25
      %p22 = scmp.ge.s32.totalorder %s21, 4
      %s31 = sphi 0, %s33
      %s34 = sphi 0, %s31
      %s35 = sphi 0, %s34
      %s51 = sphi 0, %s35
      %s55 = sphi 0, %s55
      %s57 = sphi 0, %s55
      %s58 = sphi 0, %s57
      %s72 = sphi 0, %s58
      %s76 = sphi 0, %s76
      %s78 = sphi 0, %s76
      %s79 = sphi 0, %s78
      %s93 = sphi 0, %s79
      %s97 = sphi 0, %s97
      %s99 = sphi 0, %s97
      %s100 = sphi 0, %s99
      %s114 = sphi 0, %s100
      %s118 = sphi 0, %s118
      %s120 = sphi 0, %s118
      %s121 = sphi 0, %s120
      %s135 = sphi 0, %s121
      %s139 = sphi 0, %s139
      %s141 = sphi 0, %s139
      %s142 = sphi 0, %s141
      %s156 = sphi 0, %s142
      %s160 = sphi 0, %s160
      %s162 = sphi 0, %s160
      %s163 = sphi 0, %s162
      %s177 = sphi 0, %s163
      %s181 = sphi 0, %s181
      %s183 = sphi 0, %s181
      %s184 = sphi 0, %s183
      %s198 = sphi 0, %s184
      %s202 = sphi 0, %s202
      %s204 = sphi 0, %s202
      %s205 = sphi 0, %s204
      %s219 = sphi 0, %s205
      %s225 = sphi 0, %s227
      %s228 = sphi 0, %s225
      %s229 = sphi 0, %s228
      %s245 = sphi 0, %s229
      %s251 = sphi 0, %s253
      %s254 = sphi 0, %s251
      %s255 = sphi 0, %s254
      %s271 = sphi 0, %s255
    $region4: #{convo_forward.1} parent=1 // loop_header_branch
      %24 = sbr.rel (%p22) target = $region8
    $region5: #{convo_forward.1} parent=1 // loop_body
      %s26 = ssub.s32 %s21, 1
      %s27 = ssub.s32 %s21, 2
      %s28 = sadd.s32 %s21, 1
      %s29 = ssub.s32 %s21, %s28
      %p30 = scmp.eq.s32.totalorder %s29, 0
      %s32 = sadd.s32 %s31, 1
      %s33 = scalar_select %p30, %s31, %s32
      %p36 = pneg %p30
      %p37 = scmp.eq.s32.totalorder %s21, 1
      %p38 = por %p36, %p37
      %p39 = scmp.ne.s32.totalorder %s31, %s34
      %p40 = scmp.eq.s32.totalorder %s21, 0
      %p41 = por %p39, %p40
      %p42 = scmp.ne.s32.totalorder %s31, %s34
      %p43 = scmp.eq.s32.totalorder %s26, 1
      %p44 = por %p42, %p43
      %p45 = scmp.ne.s32.totalorder %s34, %s35
      %p46 = scmp.eq.s32.totalorder %s26, 0
      %p47 = por %p45, %p46
      %p48 = scmp.ne.s32.totalorder %s34, %s35
      %p49 = scmp.eq.s32.totalorder %s27, 1
      %p50 = por %p48, %p49
      %p52 = scmp.ne.s32.totalorder %s35, %s51
      %p53 = scmp.eq.s32.totalorder %s27, 0
      %p54 = por %p52, %p53
      %s56 = sadd.s32 %s55, 1
      %p59 = scmp.eq.s32.totalorder %s21, 1
      %p60 = scmp.ne.s32.totalorder %s55, %s57
      %p61 = scmp.eq.s32.totalorder %s21, 0
      %p62 = por %p60, %p61
      %p63 = scmp.ne.s32.totalorder %s55, %s57
      %p64 = scmp.eq.s32.totalorder %s26, 1
      %p65 = por %p63, %p64
      %p66 = scmp.ne.s32.totalorder %s57, %s58
      %p67 = scmp.eq.s32.totalorder %s26, 0
      %p68 = por %p66, %p67
      %p69 = scmp.ne.s32.totalorder %s57, %s58
      %p70 = scmp.eq.s32.totalorder %s27, 1
      %p71 = por %p69, %p70
      %p73 = scmp.ne.s32.totalorder %s58, %s72
      %p74 = scmp.eq.s32.totalorder %s27, 0
      %p75 = por %p73, %p74
      %s77 = sadd.s32 %s76, 1
      %p80 = scmp.eq.s32.totalorder %s21, 1
      %p81 = scmp.ne.s32.totalorder %s76, %s78
      %p82 = scmp.eq.s32.totalorder %s21, 0
      %p83 = por %p81, %p82
      %p84 = scmp.ne.s32.totalorder %s76, %s78
      %p85 = scmp.eq.s32.totalorder %s26, 1
      %p86 = por %p84, %p85
      %p87 = scmp.ne.s32.totalorder %s78, %s79
      %p88 = scmp.eq.s32.totalorder %s26, 0
      %p89 = por %p87, %p88
      %p90 = scmp.ne.s32.totalorder %s78, %s79
      %p91 = scmp.eq.s32.totalorder %s27, 1
      %p92 = por %p90, %p91
      %p94 = scmp.ne.s32.totalorder %s79, %s93
      %p95 = scmp.eq.s32.totalorder %s27, 0
      %p96 = por %p94, %p95
      %s98 = sadd.s32 %s97, 1
      %p101 = scmp.eq.s32.totalorder %s21, 1
      %p102 = scmp.ne.s32.totalorder %s97, %s99
      %p103 = scmp.eq.s32.totalorder %s21, 0
      %p104 = por %p102, %p103
      %p105 = scmp.ne.s32.totalorder %s97, %s99
      %p106 = scmp.eq.s32.totalorder %s26, 1
      %p107 = por %p105, %p106
      %p108 = scmp.ne.s32.totalorder %s99, %s100
      %p109 = scmp.eq.s32.totalorder %s26, 0
      %p110 = por %p108, %p109
      %p111 = scmp.ne.s32.totalorder %s99, %s100
      %p112 = scmp.eq.s32.totalorder %s27, 1
      %p113 = por %p111, %p112
      %p115 = scmp.ne.s32.totalorder %s100, %s114
      %p116 = scmp.eq.s32.totalorder %s27, 0
      %p117 = por %p115, %p116
      %s119 = sadd.s32 %s118, 1
      %p122 = scmp.eq.s32.totalorder %s21, 1
      %p123 = scmp.ne.s32.totalorder %s118, %s120
      %p124 = scmp.eq.s32.totalorder %s21, 0
      %p125 = por %p123, %p124
      %p126 = scmp.ne.s32.totalorder %s118, %s120
      %p127 = scmp.eq.s32.totalorder %s26, 1
      %p128 = por %p126, %p127
      %p129 = scmp.ne.s32.totalorder %s120, %s121
      %p130 = scmp.eq.s32.totalorder %s26, 0
      %p131 = por %p129, %p130
      %p132 = scmp.ne.s32.totalorder %s120, %s121
      %p133 = scmp.eq.s32.totalorder %s27, 1
      %p134 = por %p132, %p133
      %p136 = scmp.ne.s32.totalorder %s121, %s135
      %p137 = scmp.eq.s32.totalorder %s27, 0
      %p138 = por %p136, %p137
      %s140 = sadd.s32 %s139, 1
      %p143 = scmp.eq.s32.totalorder %s21, 1
      %p144 = scmp.ne.s32.totalorder %s139, %s141
      %p145 = scmp.eq.s32.totalorder %s21, 0
      %p146 = por %p144, %p145
      %p147 = scmp.ne.s32.totalorder %s139, %s141
      %p148 = scmp.eq.s32.totalorder %s26, 1
      %p149 = por %p147, %p148
      %p150 = scmp.ne.s32.totalorder %s141, %s142
      %p151 = scmp.eq.s32.totalorder %s26, 0
      %p152 = por %p150, %p151
      %p153 = scmp.ne.s32.totalorder %s141, %s142
      %p154 = scmp.eq.s32.totalorder %s27, 1
      %p155 = por %p153, %p154
      %p157 = scmp.ne.s32.totalorder %s142, %s156
      %p158 = scmp.eq.s32.totalorder %s27, 0
      %p159 = por %p157, %p158
      %s161 = sadd.s32 %s160, 1
      %p164 = scmp.eq.s32.totalorder %s21, 1
      %p165 = scmp.ne.s32.totalorder %s160, %s162
      %p166 = scmp.eq.s32.totalorder %s21, 0
      %p167 = por %p165, %p166
      %p168 = scmp.ne.s32.totalorder %s160, %s162
      %p169 = scmp.eq.s32.totalorder %s26, 1
      %p170 = por %p168, %p169
      %p171 = scmp.ne.s32.totalorder %s162, %s163
      %p172 = scmp.eq.s32.totalorder %s26, 0
      %p173 = por %p171, %p172
      %p174 = scmp.ne.s32.totalorder %s162, %s163
      %p175 = scmp.eq.s32.totalorder %s27, 1
      %p176 = por %p174, %p175
      %p178 = scmp.ne.s32.totalorder %s163, %s177
      %p179 = scmp.eq.s32.totalorder %s27, 0
      %p180 = por %p178, %p179
      %s182 = sadd.s32 %s181, 1
      %p185 = scmp.eq.s32.totalorder %s21, 1
      %p186 = scmp.ne.s32.totalorder %s181, %s183
      %p187 = scmp.eq.s32.totalorder %s21, 0
      %p188 = por %p186, %p187
      %p189 = scmp.ne.s32.totalorder %s181, %s183
      %p190 = scmp.eq.s32.totalorder %s26, 1
      %p191 = por %p189, %p190
      %p192 = scmp.ne.s32.totalorder %s183, %s184
      %p193 = scmp.eq.s32.totalorder %s26, 0
      %p194 = por %p192, %p193
      %p195 = scmp.ne.s32.totalorder %s183, %s184
      %p196 = scmp.eq.s32.totalorder %s27, 1
      %p197 = por %p195, %p196
      %p199 = scmp.ne.s32.totalorder %s184, %s198
      %p200 = scmp.eq.s32.totalorder %s27, 0
      %p201 = por %p199, %p200
      %s203 = sadd.s32 %s202, 1
      %p206 = scmp.eq.s32.totalorder %s21, 1
      %p207 = scmp.ne.s32.totalorder %s202, %s204
      %p208 = scmp.eq.s32.totalorder %s21, 0
      %p209 = por %p207, %p208
      %p210 = scmp.ne.s32.totalorder %s202, %s204
      %p211 = scmp.eq.s32.totalorder %s26, 1
      %p212 = por %p210, %p211
      %p213 = scmp.ne.s32.totalorder %s204, %s205
      %p214 = scmp.eq.s32.totalorder %s26, 0
      %p215 = por %p213, %p214
      %p216 = scmp.ne.s32.totalorder %s204, %s205
      %p217 = scmp.eq.s32.totalorder %s27, 1
      %p218 = por %p216, %p217
      %p220 = scmp.ne.s32.totalorder %s205, %s219
      %p221 = scmp.eq.s32.totalorder %s27, 0
      %p222 = por %p220, %p221
      %s223 = ssub.s32 %s21, %s28
      %p224 = scmp.eq.s32.totalorder %s223, 0
      %s226 = sadd.s32 %s225, 1
      %s227 = scalar_select %p224, %s225, %s226
      %p230 = pneg %p224
      %p231 = scmp.eq.s32.totalorder %s21, 1
      %p232 = por %p230, %p231
      %p233 = scmp.ne.s32.totalorder %s225, %s228
      %p234 = scmp.eq.s32.totalorder %s21, 0
      %p235 = por %p233, %p234
      %p236 = scmp.ne.s32.totalorder %s225, %s228
      %p237 = scmp.eq.s32.totalorder %s26, 1
      %p238 = por %p236, %p237
      %p239 = scmp.ne.s32.totalorder %s228, %s229
      %p240 = scmp.eq.s32.totalorder %s26, 0
      %p241 = por %p239, %p240
      %p242 = scmp.ne.s32.totalorder %s228, %s229
      %p243 = scmp.eq.s32.totalorder %s27, 1
      %p244 = por %p242, %p243
      %p246 = scmp.ne.s32.totalorder %s229, %s245
      %p247 = scmp.eq.s32.totalorder %s27, 0
      %p248 = por %p246, %p247
      %s249 = ssub.s32 %s21, %s28
      %p250 = scmp.eq.s32.totalorder %s249, 0
      %s252 = sadd.s32 %s251, 1
      %s253 = scalar_select %p250, %s251, %s252
      %p256 = pneg %p250
      %p257 = scmp.eq.s32.totalorder %s21, 1
      %p258 = por %p256, %p257
      %p259 = scmp.ne.s32.totalorder %s251, %s254
      %p260 = scmp.eq.s32.totalorder %s21, 0
      %p261 = por %p259, %p260
      %p262 = scmp.ne.s32.totalorder %s251, %s254
      %p263 = scmp.eq.s32.totalorder %s26, 1
      %p264 = por %p262, %p263
      %p265 = scmp.ne.s32.totalorder %s254, %s255
      %p266 = scmp.eq.s32.totalorder %s26, 0
      %p267 = por %p265, %p266
      %p268 = scmp.ne.s32.totalorder %s254, %s255
      %p269 = scmp.eq.s32.totalorder %s27, 1
      %p270 = por %p268, %p269
      %p272 = scmp.ne.s32.totalorder %s255, %s271
      %p273 = scmp.eq.s32.totalorder %s27, 0
      %p274 = por %p272, %p273
      %p275 = scmp.le.s32.totalorder 1, %s21
      %p276 = scmp.lt.s32.totalorder %s21, 3
      %p277 = pnand %p275, %p276
      %p278 = pneg %p277
      // Predicated region
      $region9: #{convo_forward.1} parent=5 // pred_check
        _
      $region10: #{convo_forward.1} parent=5 // pred_check_branch
        %280 = sbr.rel (%p277) target = $region12
      $region11: #{convo_forward.1} parent=5 // pred_region
        %s281 = ssub.s32 %s21, 1
        // Predicated region
        $region13: #{convo_forward.1} parent=11 // pred_check
          %p282 = pneg %p68
        $region14: #{convo_forward.1} parent=11 // pred_check_branch
          %284 = sbr.rel (%p282) target = $region16
        $region15: #{convo_forward.1} parent=11 // pred_region
          %286 = vsyncadd [#allocation5], 0
          %s287 = sshll.u32 %s1, 4
          %s288 = int_to_ptr.hbm [resolvable:$true] %s287
          %s289 = sshll.u32 [#allocation4], 4
          %s290 = int_to_ptr.vmem [resolvable:$true] %s289
          %295 = dma.hbm_to_vmem [thread:$0]  %s288, 6144, %s290, [#allocation5], 128, 128, 8
        $region16: #{convo_forward.1} parent=11 // pred_fallthru
          _
        // Predicated region
        $region17: #{convo_forward.1} parent=11 // pred_check
          %p296 = pneg %p89
        $region18: #{convo_forward.1} parent=11 // pred_check_branch
          %298 = sbr.rel (%p296) target = $region20
        $region19: #{convo_forward.1} parent=11 // pred_region
          _
        $region20: #{convo_forward.1} parent=11 // pred_fallthru
          _
        // Predicated region
        $region21: #{convo_forward.1} parent=11 // pred_check
          %p299 = pneg %p110
        $region22: #{convo_forward.1} parent=11 // pred_check_branch
          %301 = sbr.rel (%p299) target = $region24
        $region23: #{convo_forward.1} parent=11 // pred_region
          %303 = vsyncadd [#allocation5], 0
          %s304 = sshll.u32 %s3, 4
          %s305 = int_to_ptr.hbm [resolvable:$true] %s304
          %s306 = sshll.u32 [#allocation6], 4
          %s307 = int_to_ptr.vmem [resolvable:$true] %s306
          %312 = dma.hbm_to_vmem [thread:$0]  %s305, 2048, %s307, [#allocation5], 128, 128, 8
        $region24: #{convo_forward.1} parent=11 // pred_fallthru
          _
        // Predicated region
        $region25: #{convo_forward.1} parent=11 // pred_check
          %p313 = pneg %p131
        $region26: #{convo_forward.1} parent=11 // pred_check_branch
          %315 = sbr.rel (%p313) target = $region28
        $region27: #{convo_forward.1} parent=11 // pred_region
          _
        $region28: #{convo_forward.1} parent=11 // pred_fallthru
          _
        // Predicated region
        $region29: #{convo_forward.1} parent=11 // pred_check
          %p316 = pneg %p152
        $region30: #{convo_forward.1} parent=11 // pred_check_branch
          %318 = sbr.rel (%p316) target = $region32
        $region31: #{convo_forward.1} parent=11 // pred_region
          %320 = vsyncadd [#allocation8], 0
          %s321 = sshll.u32 %s5, 4
          %s322 = int_to_ptr.hbm [resolvable:$true] %s321
          %s323 = sshll.u32 [#allocation7], 4
          %s324 = int_to_ptr.vmem [resolvable:$true] %s323
          %329 = dma.hbm_to_vmem [thread:$0]  %s322, 2048, %s324, [#allocation8], 128, 128, 8
        $region32: #{convo_forward.1} parent=11 // pred_fallthru
          _
        // Predicated region
        $region33: #{convo_forward.1} parent=11 // pred_check
          %p330 = pneg %p173
        $region34: #{convo_forward.1} parent=11 // pred_check_branch
          %332 = sbr.rel (%p330) target = $region36
        $region35: #{convo_forward.1} parent=11 // pred_region
          _
        $region36: #{convo_forward.1} parent=11 // pred_fallthru
          _
        // Predicated region
        $region37: #{convo_forward.1} parent=11 // pred_check
          %p333 = pneg %p194
        $region38: #{convo_forward.1} parent=11 // pred_check_branch
          %335 = sbr.rel (%p333) target = $region40
        $region39: #{convo_forward.1} parent=11 // pred_region
          %337 = vsyncadd [#allocation8], 0
          %s338 = sshll.u32 %s7, 4
          %s339 = int_to_ptr.hbm [resolvable:$true] %s338
          %s340 = sshll.u32 [#allocation9], 4
          %s341 = int_to_ptr.vmem [resolvable:$true] %s340
          %346 = dma.hbm_to_vmem [thread:$0]  %s339, 2048, %s341, [#allocation8], 128, 128, 8
        $region40: #{convo_forward.1} parent=11 // pred_fallthru
          _
        // Predicated region
        $region41: #{convo_forward.1} parent=11 // pred_check
          %p347 = pneg %p215
        $region42: #{convo_forward.1} parent=11 // pred_check_branch
          %349 = sbr.rel (%p347) target = $region44
        $region43: #{convo_forward.1} parent=11 // pred_region
          _
        $region44: #{convo_forward.1} parent=11 // pred_fallthru
          _
      $region12: #{convo_forward.1} parent=5 // pred_fallthru
        _
      %p350 = scmp.lt.s32.totalorder %s21, 2
      // Predicated region
      $region45: #{convo_forward.1} parent=5 // pred_check
        %p351 = pneg %p350
      $region46: #{convo_forward.1} parent=5 // pred_check_branch
        %353 = sbr.rel (%p351) target = $region48
      $region47: #{convo_forward.1} parent=5 // pred_region
        // Predicated region
        $region49: #{convo_forward.1} parent=47 // pred_check
          %p354 = pneg %p41
        $region50: #{convo_forward.1} parent=47 // pred_check_branch
          %356 = sbr.rel (%p354) target = $region52
        $region51: #{convo_forward.1} parent=47 // pred_region
          %s357 = sand.u32 %s31, 1
          %s358 = scalar_lea.sflag [#allocation3], %s357
          %s359 = sand.u32 %s31, 1
          %s360 = smul.addr %s359, 16
          %s361 = scalar_lea.vmem [#allocation2], %s360
          %363 = vsyncadd %s358, 0
          %s364 = smul.addr %s21, 2
          %s365 = smul.addr %s364, 8
          %s366 = scalar_lea.hbm %s0, %s365
          %s367 = sshll.u32 %s366, 4
          %s368 = int_to_ptr.hbm [resolvable:$true] %s367
          %s369 = sshll.u32 %s361, 4
          %s370 = int_to_ptr.vmem [resolvable:$true] %s369
          %375 = dma.hbm_to_vmem [thread:$0]  %s368, 256, %s370, %s358, 128, 128, 8
        $region52: #{convo_forward.1} parent=47 // pred_fallthru
          _
        // Predicated region
        $region53: #{convo_forward.1} parent=47 // pred_check
          %p376 = pneg %p235
        $region54: #{convo_forward.1} parent=47 // pred_check_branch
          %378 = sbr.rel (%p376) target = $region56
        $region55: #{convo_forward.1} parent=47 // pred_region
          %p379 = scmp.lt.s32.totalorder %s21, 1
          %s380 = scalar_select %p379, %s21, 1
          %s381 = scalar_lea.vmem %s9, %s380
        $region56: #{convo_forward.1} parent=47 // pred_fallthru
          _
      $region48: #{convo_forward.1} parent=5 // pred_fallthru
        _
      %p382 = scmp.le.s32.totalorder 1, %s21
      %p383 = scmp.lt.s32.totalorder %s21, 3
      %p384 = pnand %p382, %p383
      %p385 = pneg %p384
      // Predicated region
      $region57: #{convo_forward.1} parent=5 // pred_check
        _
      $region58: #{convo_forward.1} parent=5 // pred_check_branch
        %387 = sbr.rel (%p384) target = $region60
      $region59: #{convo_forward.1} parent=5 // pred_region
        %s388 = ssub.s32 %s21, 1
        %s389 = sand.u32 %s34, 1
        %s390 = scalar_lea.sflag [#allocation3], %s389
        %s391 = sand.u32 %s34, 1
        %s392 = smul.addr %s391, 16
        %s393 = scalar_lea.vmem [#allocation2], %s392
        // Predicated region
        $region61: #{convo_forward.1} parent=59 // pred_check
          %p394 = pneg %p47
        $region62: #{convo_forward.1} parent=59 // pred_check_branch
          %396 = sbr.rel (%p394) target = $region64
        $region63: #{convo_forward.1} parent=59 // pred_region
          %398 = dma.done %s390, 256
        $region64: #{convo_forward.1} parent=59 // pred_fallthru
          _
        // Predicated region
        $region65: #{convo_forward.1} parent=59 // pred_check
          %p399 = pneg %p68
        $region66: #{convo_forward.1} parent=59 // pred_check_branch
          %401 = sbr.rel (%p399) target = $region68
        $region67: #{convo_forward.1} parent=59 // pred_region
          %403 = dma.done [#allocation5], 6144
        $region68: #{convo_forward.1} parent=59 // pred_fallthru
          _
        // Predicated region
        $region69: #{convo_forward.1} parent=59 // pred_check
          %p404 = pneg %p110
        $region70: #{convo_forward.1} parent=59 // pred_check_branch
          %406 = sbr.rel (%p404) target = $region72
        $region71: #{convo_forward.1} parent=59 // pred_region
          %408 = dma.done [#allocation5], 2048
        $region72: #{convo_forward.1} parent=59 // pred_fallthru
          _
        // Predicated region
        $region73: #{convo_forward.1} parent=59 // pred_check
          %p409 = pneg %p152
        $region74: #{convo_forward.1} parent=59 // pred_check_branch
          %411 = sbr.rel (%p409) target = $region76
        $region75: #{convo_forward.1} parent=59 // pred_region
          %413 = dma.done [#allocation8], 2048
        $region76: #{convo_forward.1} parent=59 // pred_fallthru
          _
        // Predicated region
        $region77: #{convo_forward.1} parent=59 // pred_check
          %p414 = pneg %p194
        $region78: #{convo_forward.1} parent=59 // pred_check_branch
          %416 = sbr.rel (%p414) target = $region80
        $region79: #{convo_forward.1} parent=59 // pred_region
          %418 = dma.done [#allocation8], 2048
        $region80: #{convo_forward.1} parent=59 // pred_fallthru
          _
        %s419 = sand.u32 %s34, 1
        %s420 = scalar_lea.sflag [#allocation3], %s419
        %s421 = sand.u32 %s34, 1
        %s422 = smul.addr %s421, 16
        %s423 = scalar_lea.vmem [#allocation2], %s422
        %p424 = pneg %p47
        %p425 = pneg %p44
        %p426 = pneg %p68
        %p427 = pneg %p65
        %p428 = pneg %p89
        %p429 = pneg %p86
        %p430 = pneg %p110
        %p431 = pneg %p107
        %p432 = pneg %p131
        %p433 = pneg %p128
        %p434 = pneg %p152
        %p435 = pneg %p149
        %p436 = pneg %p173
        %p437 = pneg %p170
        %p438 = pneg %p194
        %p439 = pneg %p191
        %p440 = pneg %p215
        %p441 = pneg %p212
        %p442 = scmp.lt.s32.totalorder %s26, 1
        %s443 = scalar_select %p442, %s26, 1
        %s444 = scalar_lea.vmem %s9, %s443
        %p445 = pneg %p241
        %p446 = pneg %p238
        %p447 = pneg %p267
        %p448 = pneg %p264
        %p449 = scmp.lt.s32.totalorder %s26, 1
        %s450 = scalar_select %p449, %s26, 1
        %s451 = smul.addr %s450, 3
        %s452 = scalar_lea.vmem %s10, %s451
        %p453 = scmp.lt.s32.totalorder %s26, 1
        %s454 = scalar_select %p453, %s26, 1
        %s455 = scalar_lea.vmem %s9, %s454
        %p456 = scmp.lt.s32.totalorder %s26, 1
        %s457 = scalar_select %p456, %s26, 1
        %s458 = smul.addr %s457, 3
        %s459 = scalar_lea.vmem %s10, %s458
        %v460 = vld [vmem:[%s393] sm:$0xff]
        %v461 = vld [vmem:[%s393 + $0x8] sm:$0xff]
        %v462 = vlaneseq
        %v463 = vshrl.u32 %v462, 7
        %v464 = vadd.s32 %v463, 8
        %v465 = vadd.s32 %v463, 4294967295
        %v466 = vadd.s32 %v464, 4294967295
        %vm467 = vcmp.ge.s32.totalorder %v465, 0
        %vm468 = vcmp.ge.s32.totalorder %v466, 0
        %vm469 = vcmp.lt.s32.totalorder %v465, 16
        %vm470 = vcmp.lt.s32.totalorder %v466, 16
        %vm471 = vmand %vm467, %vm469
        %vm472 = vmand %vm468, %vm470
        %v473 = vadd.s32 %v463, 1
        %v474 = vadd.s32 %v464, 1
        %vm475 = vcmp.ge.s32.totalorder %v473, 0
        %vm476 = vcmp.ge.s32.totalorder %v474, 0
        %vm477 = vcmp.lt.s32.totalorder %v473, 16
        %vm478 = vcmp.lt.s32.totalorder %v474, 16
        %vm479 = vmand %vm475, %vm477
        %vm480 = vmand %vm476, %vm478
        %v481 = vrot.slane %v460, 7
        %v482 = vrot.slane %v461, 7
        %vm483 = vcmp.lt.s32.totalorder %v463, 1
        %v484 = vsel %vm483, %v481, %v482
        %v485 = vsel %vm483, %v482, %v481
        %v486 = vsel %vm471, %v485, 0.0
        %v487 = vsel %vm472, %v484, 0.0
        %v488 = vpack.c.bf16 %v487, %v486
        %v489 = vld [vmem:[#allocation4] sm:$0xff]
        %v490 = vld [vmem:[#allocation4 + $0x8] sm:$0xff]
        %v491 = vld [vmem:[#allocation4 + $0x10] sm:$0xff]
        %v492 = vld [vmem:[#allocation4 + $0x18] sm:$0xff]
        %v493 = vld [vmem:[#allocation4 + $0x20] sm:$0xff]
        %v494 = vld [vmem:[#allocation4 + $0x28] sm:$0xff]
        %v495 = vld [vmem:[#allocation4 + $0x30] sm:$0xff]
        %v496 = vld [vmem:[#allocation4 + $0x38] sm:$0xff]
        %v497 = vld [vmem:[#allocation4 + $0x40] sm:$0xff]
        %v498 = vld [vmem:[#allocation4 + $0x48] sm:$0xff]
        %v499 = vld [vmem:[#allocation4 + $0x50] sm:$0xff]
        %v500 = vld [vmem:[#allocation4 + $0x58] sm:$0xff]
        %v501 = vld [vmem:[#allocation4 + $0x60] sm:$0xff]
        %v502 = vld [vmem:[#allocation4 + $0x68] sm:$0xff]
        %v503 = vld [vmem:[#allocation4 + $0x70] sm:$0xff]
        %v504 = vld [vmem:[#allocation4 + $0x78] sm:$0xff]
        %v505 = vpack.c.bf16 %v461, %v460
        %s506 = scalar_lea.vmem [#allocation4], 128
        %v507 = vld [vmem:[%s506] sm:$0xff]
        %v508 = vld [vmem:[%s506 + $0x8] sm:$0xff]
        %v509 = vld [vmem:[%s506 + $0x10] sm:$0xff]
        %v510 = vld [vmem:[%s506 + $0x18] sm:$0xff]
        %v511 = vld [vmem:[%s506 + $0x20] sm:$0xff]
        %v512 = vld [vmem:[%s506 + $0x28] sm:$0xff]
        %v513 = vld [vmem:[%s506 + $0x30] sm:$0xff]
        %v514 = vld [vmem:[%s506 + $0x38] sm:$0xff]
        %v515 = vld [vmem:[%s506 + $0x40] sm:$0xff]
        %v516 = vld [vmem:[%s506 + $0x48] sm:$0xff]
        %v517 = vld [vmem:[%s506 + $0x50] sm:$0xff]
        %v518 = vld [vmem:[%s506 + $0x58] sm:$0xff]
        %v519 = vld [vmem:[%s506 + $0x60] sm:$0xff]
        %v520 = vld [vmem:[%s506 + $0x68] sm:$0xff]
        %v521 = vld [vmem:[%s506 + $0x70] sm:$0xff]
        %v522 = vld [vmem:[%s506 + $0x78] sm:$0xff]
        %v539 = vunpack.c.l.b16 %v507
        %v540 = vunpack.c.h.b16 %v507
        %v541 = vunpack.c.l.b16 %v508
        %v542 = vunpack.c.h.b16 %v508
        %v543 = vunpack.c.l.b16 %v509
        %v544 = vunpack.c.h.b16 %v509
        %v545 = vunpack.c.l.b16 %v510
        %v546 = vunpack.c.h.b16 %v510
        %v547 = vunpack.c.l.b16 %v511
        %v548 = vunpack.c.h.b16 %v511
        %v549 = vunpack.c.l.b16 %v512
        %v550 = vunpack.c.h.b16 %v512
        %v551 = vunpack.c.l.b16 %v513
        %v552 = vunpack.c.h.b16 %v513
        %v553 = vunpack.c.l.b16 %v514
        %v554 = vunpack.c.h.b16 %v514
        %v555 = vunpack.c.l.b16 %v515
        %v556 = vunpack.c.h.b16 %v515
        %v557 = vunpack.c.l.b16 %v516
        %v558 = vunpack.c.h.b16 %v516
        %v559 = vunpack.c.l.b16 %v517
        %v560 = vunpack.c.h.b16 %v517
        %v561 = vunpack.c.l.b16 %v518
        %v562 = vunpack.c.h.b16 %v518
        %v563 = vunpack.c.l.b16 %v519
        %v564 = vunpack.c.h.b16 %v519
        %v565 = vunpack.c.l.b16 %v520
        %v566 = vunpack.c.h.b16 %v520
        %v567 = vunpack.c.l.b16 %v521
        %v568 = vunpack.c.h.b16 %v521
        %v569 = vunpack.c.l.b16 %v522
        %v570 = vunpack.c.h.b16 %v522
        %v571 = vpack.c.b16 %v541, %v539
        %v572 = vpack.c.b16 %v542, %v540
        %v573 = vpack.c.b16 %v545, %v543
        %v574 = vpack.c.b16 %v546, %v544
        %v575 = vpack.c.b16 %v549, %v547
        %v576 = vpack.c.b16 %v550, %v548
        %v577 = vpack.c.b16 %v553, %v551
        %v578 = vpack.c.b16 %v554, %v552
        %v579 = vpack.c.b16 %v557, %v555
        %v580 = vpack.c.b16 %v558, %v556
        %v581 = vpack.c.b16 %v561, %v559
        %v582 = vpack.c.b16 %v562, %v560
        %v583 = vpack.c.b16 %v565, %v563
        %v584 = vpack.c.b16 %v566, %v564
        %v585 = vpack.c.b16 %v569, %v567
        %v586 = vpack.c.b16 %v570, %v568
        %603 = vmatpush.bf16.msra.mxu0 %v585
        %604 = vmatpush.bf16.msra.mxu0 %v583
        %605 = vmatpush.bf16.msra.mxu0 %v581
        %606 = vmatpush.bf16.msra.mxu0 %v579
        %607 = vmatpush.bf16.msra.mxu0 %v577
        %608 = vmatpush.bf16.msra.mxu0 %v575
        %609 = vmatpush.bf16.msra.mxu0 %v573
        %610 = vmatpush.bf16.msra.mxu0 %v571
        %611 = vmatmul.bf16.gmra.mxu0 %v505
        %v612 = vpop.f32.mrf.mxu0
        %v613 = vadd.f32 0.0, %v612
        %v614 = vpop.f32.mrf.mxu0
        %v615 = vadd.f32 0.0, %v614
        %616 = vdwg.mxu0
        %617 = vmatpush.bf16.msra.mxu0 %v586
        %618 = vmatpush.bf16.msra.mxu0 %v584
        %619 = vmatpush.bf16.msra.mxu0 %v582
        %620 = vmatpush.bf16.msra.mxu0 %v580
        %621 = vmatpush.bf16.msra.mxu0 %v578
        %622 = vmatpush.bf16.msra.mxu0 %v576
        %623 = vmatpush.bf16.msra.mxu0 %v574
        %624 = vmatpush.bf16.msra.mxu0 %v572
        %625 = vmatmul.bf16.gmra.mxu0 %v505
        %v626 = vpop.f32.mrf.mxu0
        %v627 = vadd.f32 0.0, %v626
        %v628 = vpop.f32.mrf.mxu0
        %v629 = vadd.f32 0.0, %v628
        %630 = vdwg.mxu0
        %v647 = vunpack.c.l.b16 %v489
        %v648 = vunpack.c.h.b16 %v489
        %v649 = vunpack.c.l.b16 %v490
        %v650 = vunpack.c.h.b16 %v490
        %v651 = vunpack.c.l.b16 %v491
        %v652 = vunpack.c.h.b16 %v491
        %v653 = vunpack.c.l.b16 %v492
        %v654 = vunpack.c.h.b16 %v492
        %v655 = vunpack.c.l.b16 %v493
        %v656 = vunpack.c.h.b16 %v493
        %v657 = vunpack.c.l.b16 %v494
        %v658 = vunpack.c.h.b16 %v494
        %v659 = vunpack.c.l.b16 %v495
        %v660 = vunpack.c.h.b16 %v495
        %v661 = vunpack.c.l.b16 %v496
        %v662 = vunpack.c.h.b16 %v496
        %v663 = vunpack.c.l.b16 %v497
        %v664 = vunpack.c.h.b16 %v497
        %v665 = vunpack.c.l.b16 %v498
        %v666 = vunpack.c.h.b16 %v498
        %v667 = vunpack.c.l.b16 %v499
        %v668 = vunpack.c.h.b16 %v499
        %v669 = vunpack.c.l.b16 %v500
        %v670 = vunpack.c.h.b16 %v500
        %v671 = vunpack.c.l.b16 %v501
        %v672 = vunpack.c.h.b16 %v501
        %v673 = vunpack.c.l.b16 %v502
        %v674 = vunpack.c.h.b16 %v502
        %v675 = vunpack.c.l.b16 %v503
        %v676 = vunpack.c.h.b16 %v503
        %v677 = vunpack.c.l.b16 %v504
        %v678 = vunpack.c.h.b16 %v504
        %v679 = vpack.c.b16 %v649, %v647
        %v680 = vpack.c.b16 %v650, %v648
        %v681 = vpack.c.b16 %v653, %v651
        %v682 = vpack.c.b16 %v654, %v652
        %v683 = vpack.c.b16 %v657, %v655
        %v684 = vpack.c.b16 %v658, %v656
        %v685 = vpack.c.b16 %v661, %v659
        %v686 = vpack.c.b16 %v662, %v660
        %v687 = vpack.c.b16 %v665, %v663
        %v688 = vpack.c.b16 %v666, %v664
        %v689 = vpack.c.b16 %v669, %v667
        %v690 = vpack.c.b16 %v670, %v668
        %v691 = vpack.c.b16 %v673, %v671
        %v692 = vpack.c.b16 %v674, %v672
        %v693 = vpack.c.b16 %v677, %v675
        %v694 = vpack.c.b16 %v678, %v676
        %711 = vmatpush.bf16.msra.mxu0 %v693
        %712 = vmatpush.bf16.msra.mxu0 %v691
        %713 = vmatpush.bf16.msra.mxu0 %v689
        %714 = vmatpush.bf16.msra.mxu0 %v687
        %715 = vmatpush.bf16.msra.mxu0 %v685
        %716 = vmatpush.bf16.msra.mxu0 %v683
        %717 = vmatpush.bf16.msra.mxu0 %v681
        %718 = vmatpush.bf16.msra.mxu0 %v679
        %719 = vmatmul.bf16.gmra.mxu0 %v488
        %v720 = vpop.f32.mrf.mxu0
        %v721 = vadd.f32 %v613, %v720
        %v722 = vpop.f32.mrf.mxu0
        %v723 = vadd.f32 %v615, %v722
        %724 = vdwg.mxu0
        %725 = vmatpush.bf16.msra.mxu0 %v694
        %726 = vmatpush.bf16.msra.mxu0 %v692
        %727 = vmatpush.bf16.msra.mxu0 %v690
        %728 = vmatpush.bf16.msra.mxu0 %v688
        %729 = vmatpush.bf16.msra.mxu0 %v686
        %730 = vmatpush.bf16.msra.mxu0 %v684
        %731 = vmatpush.bf16.msra.mxu0 %v682
        %732 = vmatpush.bf16.msra.mxu0 %v680
        %733 = vmatmul.bf16.gmra.mxu0 %v488
        %v734 = vpop.f32.mrf.mxu0
        %v735 = vadd.f32 %v627, %v734
        %v736 = vpop.f32.mrf.mxu0
        %v737 = vadd.f32 %v629, %v736
        %738 = vdwg.mxu0
        %v739 = vrot.slane %v460, 1
        %v740 = vrot.slane %v461, 1
        %vm741 = vcmp.lt.s32.totalorder %v463, 7
        %v742 = vsel %vm741, %v739, %v740
        %v743 = vsel %vm741, %v740, %v739
        %v744 = vsel %vm479, %v742, 0.0
        %v745 = vsel %vm480, %v743, 0.0
        %v746 = vpack.c.bf16 %v745, %v744
        %s747 = scalar_lea.vmem [#allocation4], 256
        %v748 = vld [vmem:[%s747] sm:$0xff]
        %v749 = vld [vmem:[%s747 + $0x8] sm:$0xff]
        %v750 = vld [vmem:[%s747 + $0x10] sm:$0xff]
        %v751 = vld [vmem:[%s747 + $0x18] sm:$0xff]
        %v752 = vld [vmem:[%s747 + $0x20] sm:$0xff]
        %v753 = vld [vmem:[%s747 + $0x28] sm:$0xff]
        %v754 = vld [vmem:[%s747 + $0x30] sm:$0xff]
        %v755 = vld [vmem:[%s747 + $0x38] sm:$0xff]
        %v756 = vld [vmem:[%s747 + $0x40] sm:$0xff]
        %v757 = vld [vmem:[%s747 + $0x48] sm:$0xff]
        %v758 = vld [vmem:[%s747 + $0x50] sm:$0xff]
        %v759 = vld [vmem:[%s747 + $0x58] sm:$0xff]
        %v760 = vld [vmem:[%s747 + $0x60] sm:$0xff]
        %v761 = vld [vmem:[%s747 + $0x68] sm:$0xff]
        %v762 = vld [vmem:[%s747 + $0x70] sm:$0xff]
        %v763 = vld [vmem:[%s747 + $0x78] sm:$0xff]
        %v780 = vunpack.c.l.b16 %v748
        %v781 = vunpack.c.h.b16 %v748
        %v782 = vunpack.c.l.b16 %v749
        %v783 = vunpack.c.h.b16 %v749
        %v784 = vunpack.c.l.b16 %v750
        %v785 = vunpack.c.h.b16 %v750
        %v786 = vunpack.c.l.b16 %v751
        %v787 = vunpack.c.h.b16 %v751
        %v788 = vunpack.c.l.b16 %v752
        %v789 = vunpack.c.h.b16 %v752
        %v790 = vunpack.c.l.b16 %v753
        %v791 = vunpack.c.h.b16 %v753
        %v792 = vunpack.c.l.b16 %v754
        %v793 = vunpack.c.h.b16 %v754
        %v794 = vunpack.c.l.b16 %v755
        %v795 = vunpack.c.h.b16 %v755
        %v796 = vunpack.c.l.b16 %v756
        %v797 = vunpack.c.h.b16 %v756
        %v798 = vunpack.c.l.b16 %v757
        %v799 = vunpack.c.h.b16 %v757
        %v800 = vunpack.c.l.b16 %v758
        %v801 = vunpack.c.h.b16 %v758
        %v802 = vunpack.c.l.b16 %v759
        %v803 = vunpack.c.h.b16 %v759
        %v804 = vunpack.c.l.b16 %v760
        %v805 = vunpack.c.h.b16 %v760
        %v806 = vunpack.c.l.b16 %v761
        %v807 = vunpack.c.h.b16 %v761
        %v808 = vunpack.c.l.b16 %v762
        %v809 = vunpack.c.h.b16 %v762
        %v810 = vunpack.c.l.b16 %v763
        %v811 = vunpack.c.h.b16 %v763
        %v812 = vpack.c.b16 %v782, %v780
        %v813 = vpack.c.b16 %v783, %v781
        %v814 = vpack.c.b16 %v786, %v784
        %v815 = vpack.c.b16 %v787, %v785
        %v816 = vpack.c.b16 %v790, %v788
        %v817 = vpack.c.b16 %v791, %v789
        %v818 = vpack.c.b16 %v794, %v792
        %v819 = vpack.c.b16 %v795, %v793
        %v820 = vpack.c.b16 %v798, %v796
        %v821 = vpack.c.b16 %v799, %v797
        %v822 = vpack.c.b16 %v802, %v800
        %v823 = vpack.c.b16 %v803, %v801
        %v824 = vpack.c.b16 %v806, %v804
        %v825 = vpack.c.b16 %v807, %v805
        %v826 = vpack.c.b16 %v810, %v808
        %v827 = vpack.c.b16 %v811, %v809
        %844 = vmatpush.bf16.msra.mxu0 %v826
        %845 = vmatpush.bf16.msra.mxu0 %v824
        %846 = vmatpush.bf16.msra.mxu0 %v822
        %847 = vmatpush.bf16.msra.mxu0 %v820
        %848 = vmatpush.bf16.msra.mxu0 %v818
        %849 = vmatpush.bf16.msra.mxu0 %v816
        %850 = vmatpush.bf16.msra.mxu0 %v814
        %851 = vmatpush.bf16.msra.mxu0 %v812
        %852 = vmatmul.bf16.gmra.mxu0 %v746
        %v853 = vpop.f32.mrf.mxu0
        %v854 = vadd.f32 0.0, %v853
        %v855 = vpop.f32.mrf.mxu0
        %v856 = vadd.f32 0.0, %v855
        %857 = vdwg.mxu0
        %858 = vmatpush.bf16.msra.mxu0 %v827
        %859 = vmatpush.bf16.msra.mxu0 %v825
        %860 = vmatpush.bf16.msra.mxu0 %v823
        %861 = vmatpush.bf16.msra.mxu0 %v821
        %862 = vmatpush.bf16.msra.mxu0 %v819
        %863 = vmatpush.bf16.msra.mxu0 %v817
        %864 = vmatpush.bf16.msra.mxu0 %v815
        %865 = vmatpush.bf16.msra.mxu0 %v813
        %866 = vmatmul.bf16.gmra.mxu0 %v746
        %v867 = vpop.f32.mrf.mxu0
        %v868 = vadd.f32 0.0, %v867
        %v869 = vpop.f32.mrf.mxu0
        %v870 = vadd.f32 0.0, %v869
        %871 = vdwg.mxu0
        %v872 = vadd.f32 %v721, %v854
        %v873 = vadd.f32 %v735, %v868
        %v874 = vadd.f32 %v723, %v856
        %v875 = vadd.f32 %v737, %v870
        %v876 = vld [vmem:[%s2] sm:$0x3]
        %v878 = vperm.slane %v876, 0
        %v879 = vperm.slane %v876, 1
        %v882 = vadd.f32 %v872, %v878
        %v883 = vadd.f32 %v873, %v879
        %v884 = vadd.f32 %v874, %v878
        %v885 = vadd.f32 %v875, %v879
        %v886 = vxor.u32 %v883, 2147483648
        %v887 = vxor.u32 %v885, 2147483648
        %v888 = vmul.f32 %v886, 1.442695
        %v889 = vpow.pop %v888
        %v890 = vmul.f32 %v887, 1.442695
        %v891 = vpow.pop %v890
        %v892 = vadd.f32 %v889, 1.0
        %v893 = vadd.f32 %v891, 1.0
        %v894 = vrcp.pop %v892
        %v895 = vmul.f32 %v892, %v894
        %v896 = vsub.f32 1.0, %v895
        %v897 = vmul.f32 %v894, %v896
        %v898 = vadd.f32 %v894, %v897
        %vm899 = vweird.f32 %v892
        %vm900 = vweird.f32 %v894
        %vm901 = vmor %vm899, %vm900
        %v902 = vsel %vm901, %v894, %v898
        %v903 = vand.u32 2147483647, %v892
        %vm904 = vcmp.eq.f32.partialorder %v903, 8.507059e+37
        %v905 = vand.u32 %v892, 2147483648
        %v906 = vor.u32 1.1754944e-38, %v905
        %v907 = vsel %vm904, %v906, %v902
        %v908 = vmul.f32 1.0, %v907
        %v909 = vrcp.pop %v893
        %v910 = vmul.f32 %v893, %v909
        %v911 = vsub.f32 1.0, %v910
        %v912 = vmul.f32 %v909, %v911
        %v913 = vadd.f32 %v909, %v912
        %vm914 = vweird.f32 %v893
        %vm915 = vweird.f32 %v909
        %vm916 = vmor %vm914, %vm915
        %v917 = vsel %vm916, %v909, %v913
        %v918 = vand.u32 2147483647, %v893
        %vm919 = vcmp.eq.f32.partialorder %v918, 8.507059e+37
        %v920 = vand.u32 %v893, 2147483648
        %v921 = vor.u32 1.1754944e-38, %v920
        %v922 = vsel %vm919, %v921, %v917
        %v923 = vmul.f32 1.0, %v922
        %v924 = vmul.f32 %v882, %v908
        %v925 = vmul.f32 %v884, %v923
        %v926 = vrot.slane %v924, 7
        %v927 = vrot.slane %v925, 7
        %v928 = vsel %vm483, %v926, %v927
        %v929 = vsel %vm483, %v927, %v926
        %v930 = vsel %vm471, %v929, 0.0
        %v931 = vsel %vm472, %v928, 0.0
        %v932 = vadd.f32 %v930, 0.0
        %v933 = vadd.f32 %v931, 0.0
        %934 = vrot.lane.b32.xlu0 %v924, 8
        %v935 = vpop.permute.xlu0 %934
        %936 = vrot.lane.b32.xlu0 %v925, 8
        %v937 = vpop.permute.xlu0 %936
        %v938 = vadd.f32 %v932, %v935
        %v939 = vadd.f32 %v933, %v937
        %940 = vrot.lane.b32.xlu0 %v924, 16
        %v941 = vpop.permute.xlu0 %940
        %942 = vrot.lane.b32.xlu0 %v925, 16
        %v943 = vpop.permute.xlu0 %942
        %v944 = vrot.slane %v941, 1
        %v945 = vrot.slane %v943, 1
        %v946 = vsel %vm741, %v944, %v945
        %v947 = vsel %vm741, %v945, %v944
        %v948 = vsel %vm479, %v946, 0.0
        %v949 = vsel %vm480, %v947, 0.0
        %v950 = vadd.f32 %v938, %v948
        %v951 = vadd.f32 %v939, %v949
        %v952 = vpack.c.bf16 %v951, %v950
        %v953 = vld [vmem:[#allocation6] sm:$0xff]
        %v954 = vld [vmem:[#allocation6 + $0x8] sm:$0xff]
        %v955 = vld [vmem:[#allocation6 + $0x10] sm:$0xff]
        %v956 = vld [vmem:[#allocation6 + $0x18] sm:$0xff]
        %v957 = vld [vmem:[#allocation6 + $0x20] sm:$0xff]
        %v958 = vld [vmem:[#allocation6 + $0x28] sm:$0xff]
        %v959 = vld [vmem:[#allocation6 + $0x30] sm:$0xff]
        %v960 = vld [vmem:[#allocation6 + $0x38] sm:$0xff]
        %v961 = vld [vmem:[#allocation6 + $0x40] sm:$0xff]
        %v962 = vld [vmem:[#allocation6 + $0x48] sm:$0xff]
        %v963 = vld [vmem:[#allocation6 + $0x50] sm:$0xff]
        %v964 = vld [vmem:[#allocation6 + $0x58] sm:$0xff]
        %v965 = vld [vmem:[#allocation6 + $0x60] sm:$0xff]
        %v966 = vld [vmem:[#allocation6 + $0x68] sm:$0xff]
        %v967 = vld [vmem:[#allocation6 + $0x70] sm:$0xff]
        %v968 = vld [vmem:[#allocation6 + $0x78] sm:$0xff]
        %v969 = vld [vmem:[%s4] sm:$0x3]
        %v971 = vperm.slane %v969, 0
        %v972 = vperm.slane %v969, 1
        %v991 = vunpack.c.l.b16 %v953
        %v992 = vunpack.c.h.b16 %v953
        %v993 = vunpack.c.l.b16 %v954
        %v994 = vunpack.c.h.b16 %v954
        %v995 = vunpack.c.l.b16 %v955
        %v996 = vunpack.c.h.b16 %v955
        %v997 = vunpack.c.l.b16 %v956
        %v998 = vunpack.c.h.b16 %v956
        %v999 = vunpack.c.l.b16 %v957
        %v1000 = vunpack.c.h.b16 %v957
        %v1001 = vunpack.c.l.b16 %v958
        %v1002 = vunpack.c.h.b16 %v958
        %v1003 = vunpack.c.l.b16 %v959
        %v1004 = vunpack.c.h.b16 %v959
        %v1005 = vunpack.c.l.b16 %v960
        %v1006 = vunpack.c.h.b16 %v960
        %v1007 = vunpack.c.l.b16 %v961
        %v1008 = vunpack.c.h.b16 %v961
        %v1009 = vunpack.c.l.b16 %v962
        %v1010 = vunpack.c.h.b16 %v962
        %v1011 = vunpack.c.l.b16 %v963
        %v1012 = vunpack.c.h.b16 %v963
        %v1013 = vunpack.c.l.b16 %v964
        %v1014 = vunpack.c.h.b16 %v964
        %v1015 = vunpack.c.l.b16 %v965
        %v1016 = vunpack.c.h.b16 %v965
        %v1017 = vunpack.c.l.b16 %v966
        %v1018 = vunpack.c.h.b16 %v966
        %v1019 = vunpack.c.l.b16 %v967
        %v1020 = vunpack.c.h.b16 %v967
        %v1021 = vunpack.c.l.b16 %v968
        %v1022 = vunpack.c.h.b16 %v968
        %v1023 = vpack.c.b16 %v993, %v991
        %v1024 = vpack.c.b16 %v994, %v992
        %v1025 = vpack.c.b16 %v997, %v995
        %v1026 = vpack.c.b16 %v998, %v996
        %v1027 = vpack.c.b16 %v1001, %v999
        %v1028 = vpack.c.b16 %v1002, %v1000
        %v1029 = vpack.c.b16 %v1005, %v1003
        %v1030 = vpack.c.b16 %v1006, %v1004
        %v1031 = vpack.c.b16 %v1009, %v1007
        %v1032 = vpack.c.b16 %v1010, %v1008
        %v1033 = vpack.c.b16 %v1013, %v1011
        %v1034 = vpack.c.b16 %v1014, %v1012
        %v1035 = vpack.c.b16 %v1017, %v1015
        %v1036 = vpack.c.b16 %v1018, %v1016
        %v1037 = vpack.c.b16 %v1021, %v1019
        %v1038 = vpack.c.b16 %v1022, %v1020
        %1055 = vmatpush.bf16.msra.mxu0 %v1037
        %1056 = vmatpush.bf16.msra.mxu0 %v1035
        %1057 = vmatpush.bf16.msra.mxu0 %v1033
        %1058 = vmatpush.bf16.msra.mxu0 %v1031
        %1059 = vmatpush.bf16.msra.mxu0 %v1029
        %1060 = vmatpush.bf16.msra.mxu0 %v1027
        %1061 = vmatpush.bf16.msra.mxu0 %v1025
        %1062 = vmatpush.bf16.msra.mxu0 %v1023
        %1063 = vmatmul.bf16.gmra.mxu0 %v952
        %v1064 = vpop.f32.mrf.mxu0
        %v1065 = vadd.f32 %v971, %v1064
        %v1066 = vpop.f32.mrf.mxu0
        %v1067 = vadd.f32 %v971, %v1066
        %1068 = vdwg.mxu0
        %1069 = vmatpush.bf16.msra.mxu0 %v1038
        %1070 = vmatpush.bf16.msra.mxu0 %v1036
        %1071 = vmatpush.bf16.msra.mxu0 %v1034
        %1072 = vmatpush.bf16.msra.mxu0 %v1032
        %1073 = vmatpush.bf16.msra.mxu0 %v1030
        %1074 = vmatpush.bf16.msra.mxu0 %v1028
        %1075 = vmatpush.bf16.msra.mxu0 %v1026
        %1076 = vmatpush.bf16.msra.mxu0 %v1024
        %1077 = vmatmul.bf16.gmra.mxu0 %v952
        %v1078 = vpop.f32.mrf.mxu0
        %v1079 = vadd.f32 %v972, %v1078
        %v1080 = vpop.f32.mrf.mxu0
        %v1081 = vadd.f32 %v972, %v1080
        %1082 = vdwg.mxu0
        %v1083 = vxor.u32 %v1079, 2147483648
        %v1084 = vxor.u32 %v1081, 2147483648
        %v1085 = vmul.f32 %v1083, 1.442695
        %v1086 = vpow.pop %v1085
        %v1087 = vmul.f32 %v1084, 1.442695
        %v1088 = vpow.pop %v1087
        %v1089 = vadd.f32 %v1086, 1.0
        %v1090 = vadd.f32 %v1088, 1.0
        %v1091 = vrcp.pop %v1089
        %v1092 = vmul.f32 %v1089, %v1091
        %v1093 = vsub.f32 1.0, %v1092
        %v1094 = vmul.f32 %v1091, %v1093
        %v1095 = vadd.f32 %v1091, %v1094
        %vm1096 = vweird.f32 %v1089
        %vm1097 = vweird.f32 %v1091
        %vm1098 = vmor %vm1096, %vm1097
        %v1099 = vsel %vm1098, %v1091, %v1095
        %v1100 = vand.u32 2147483647, %v1089
        %vm1101 = vcmp.eq.f32.partialorder %v1100, 8.507059e+37
        %v1102 = vand.u32 %v1089, 2147483648
        %v1103 = vor.u32 1.1754944e-38, %v1102
        %v1104 = vsel %vm1101, %v1103, %v1099
        %v1105 = vmul.f32 1.0, %v1104
        %v1106 = vrcp.pop %v1090
        %v1107 = vmul.f32 %v1090, %v1106
        %v1108 = vsub.f32 1.0, %v1107
        %v1109 = vmul.f32 %v1106, %v1108
        %v1110 = vadd.f32 %v1106, %v1109
        %vm1111 = vweird.f32 %v1090
        %vm1112 = vweird.f32 %v1106
        %vm1113 = vmor %vm1111, %vm1112
        %v1114 = vsel %vm1113, %v1106, %v1110
        %v1115 = vand.u32 2147483647, %v1090
        %vm1116 = vcmp.eq.f32.partialorder %v1115, 8.507059e+37
        %v1117 = vand.u32 %v1090, 2147483648
        %v1118 = vor.u32 1.1754944e-38, %v1117
        %v1119 = vsel %vm1116, %v1118, %v1114
        %v1120 = vmul.f32 1.0, %v1119
        %v1121 = vmul.f32 %v1065, %v1105
        %v1122 = vmul.f32 %v1067, %v1120
        %v1123 = vrot.slane %v1121, 7
        %v1124 = vrot.slane %v1122, 7
        %v1125 = vsel %vm483, %v1123, %v1124
        %v1126 = vsel %vm483, %v1124, %v1123
        %v1127 = vsel %vm471, %v1126, 0.0
        %v1128 = vsel %vm472, %v1125, 0.0
        %v1129 = vadd.f32 %v1127, 0.0
        %v1130 = vadd.f32 %v1128, 0.0
        %1131 = vrot.lane.b32.xlu0 %v1121, 16
        %v1132 = vpop.permute.xlu0 %1131
        %1133 = vrot.lane.b32.xlu0 %v1122, 16
        %v1134 = vpop.permute.xlu0 %1133
        %v1135 = vadd.f32 %v1129, %v1132
        %v1136 = vadd.f32 %v1130, %v1134
        %1137 = vrot.lane.b32.xlu0 %v1121, 32
        %v1138 = vpop.permute.xlu0 %1137
        %1139 = vrot.lane.b32.xlu0 %v1122, 32
        %v1140 = vpop.permute.xlu0 %1139
        %v1141 = vrot.slane %v1138, 1
        %v1142 = vrot.slane %v1140, 1
        %v1143 = vsel %vm741, %v1141, %v1142
        %v1144 = vsel %vm741, %v1142, %v1141
        %v1145 = vsel %vm479, %v1143, 0.0
        %v1146 = vsel %vm480, %v1144, 0.0
        %v1147 = vadd.f32 %v1135, %v1145
        %v1148 = vadd.f32 %v1136, %v1146
        %v1149 = vpack.c.bf16 %v1148, %v1147
        %v1150 = vld [vmem:[#allocation7] sm:$0xff]
        %v1151 = vld [vmem:[#allocation7 + $0x8] sm:$0xff]
        %v1152 = vld [vmem:[#allocation7 + $0x10] sm:$0xff]
        %v1153 = vld [vmem:[#allocation7 + $0x18] sm:$0xff]
        %v1154 = vld [vmem:[#allocation7 + $0x20] sm:$0xff]
        %v1155 = vld [vmem:[#allocation7 + $0x28] sm:$0xff]
        %v1156 = vld [vmem:[#allocation7 + $0x30] sm:$0xff]
        %v1157 = vld [vmem:[#allocation7 + $0x38] sm:$0xff]
        %v1158 = vld [vmem:[#allocation7 + $0x40] sm:$0xff]
        %v1159 = vld [vmem:[#allocation7 + $0x48] sm:$0xff]
        %v1160 = vld [vmem:[#allocation7 + $0x50] sm:$0xff]
        %v1161 = vld [vmem:[#allocation7 + $0x58] sm:$0xff]
        %v1162 = vld [vmem:[#allocation7 + $0x60] sm:$0xff]
        %v1163 = vld [vmem:[#allocation7 + $0x68] sm:$0xff]
        %v1164 = vld [vmem:[#allocation7 + $0x70] sm:$0xff]
        %v1165 = vld [vmem:[#allocation7 + $0x78] sm:$0xff]
        %v1166 = vld [vmem:[%s6] sm:$0x3]
        %v1168 = vperm.slane %v1166, 0
        %v1169 = vperm.slane %v1166, 1
        %v1188 = vunpack.c.l.b16 %v1150
        %v1189 = vunpack.c.h.b16 %v1150
        %v1190 = vunpack.c.l.b16 %v1151
        %v1191 = vunpack.c.h.b16 %v1151
        %v1192 = vunpack.c.l.b16 %v1152
        %v1193 = vunpack.c.h.b16 %v1152
        %v1194 = vunpack.c.l.b16 %v1153
        %v1195 = vunpack.c.h.b16 %v1153
        %v1196 = vunpack.c.l.b16 %v1154
        %v1197 = vunpack.c.h.b16 %v1154
        %v1198 = vunpack.c.l.b16 %v1155
        %v1199 = vunpack.c.h.b16 %v1155
        %v1200 = vunpack.c.l.b16 %v1156
        %v1201 = vunpack.c.h.b16 %v1156
        %v1202 = vunpack.c.l.b16 %v1157
        %v1203 = vunpack.c.h.b16 %v1157
        %v1204 = vunpack.c.l.b16 %v1158
        %v1205 = vunpack.c.h.b16 %v1158
        %v1206 = vunpack.c.l.b16 %v1159
        %v1207 = vunpack.c.h.b16 %v1159
        %v1208 = vunpack.c.l.b16 %v1160
        %v1209 = vunpack.c.h.b16 %v1160
        %v1210 = vunpack.c.l.b16 %v1161
        %v1211 = vunpack.c.h.b16 %v1161
        %v1212 = vunpack.c.l.b16 %v1162
        %v1213 = vunpack.c.h.b16 %v1162
        %v1214 = vunpack.c.l.b16 %v1163
        %v1215 = vunpack.c.h.b16 %v1163
        %v1216 = vunpack.c.l.b16 %v1164
        %v1217 = vunpack.c.h.b16 %v1164
        %v1218 = vunpack.c.l.b16 %v1165
        %v1219 = vunpack.c.h.b16 %v1165
        %v1220 = vpack.c.b16 %v1190, %v1188
        %v1221 = vpack.c.b16 %v1191, %v1189
        %v1222 = vpack.c.b16 %v1194, %v1192
        %v1223 = vpack.c.b16 %v1195, %v1193
        %v1224 = vpack.c.b16 %v1198, %v1196
        %v1225 = vpack.c.b16 %v1199, %v1197
        %v1226 = vpack.c.b16 %v1202, %v1200
        %v1227 = vpack.c.b16 %v1203, %v1201
        %v1228 = vpack.c.b16 %v1206, %v1204
        %v1229 = vpack.c.b16 %v1207, %v1205
        %v1230 = vpack.c.b16 %v1210, %v1208
        %v1231 = vpack.c.b16 %v1211, %v1209
        %v1232 = vpack.c.b16 %v1214, %v1212
        %v1233 = vpack.c.b16 %v1215, %v1213
        %v1234 = vpack.c.b16 %v1218, %v1216
        %v1235 = vpack.c.b16 %v1219, %v1217
        %1252 = vmatpush.bf16.msra.mxu0 %v1234
        %1253 = vmatpush.bf16.msra.mxu0 %v1232
        %1254 = vmatpush.bf16.msra.mxu0 %v1230
        %1255 = vmatpush.bf16.msra.mxu0 %v1228
        %1256 = vmatpush.bf16.msra.mxu0 %v1226
        %1257 = vmatpush.bf16.msra.mxu0 %v1224
        %1258 = vmatpush.bf16.msra.mxu0 %v1222
        %1259 = vmatpush.bf16.msra.mxu0 %v1220
        %1260 = vmatmul.bf16.gmra.mxu0 %v1149
        %v1261 = vpop.f32.mrf.mxu0
        %v1262 = vadd.f32 %v1168, %v1261
        %v1263 = vpop.f32.mrf.mxu0
        %v1264 = vadd.f32 %v1168, %v1263
        %1265 = vdwg.mxu0
        %1266 = vmatpush.bf16.msra.mxu0 %v1235
        %1267 = vmatpush.bf16.msra.mxu0 %v1233
        %1268 = vmatpush.bf16.msra.mxu0 %v1231
        %1269 = vmatpush.bf16.msra.mxu0 %v1229
        %1270 = vmatpush.bf16.msra.mxu0 %v1227
        %1271 = vmatpush.bf16.msra.mxu0 %v1225
        %1272 = vmatpush.bf16.msra.mxu0 %v1223
        %1273 = vmatpush.bf16.msra.mxu0 %v1221
        %1274 = vmatmul.bf16.gmra.mxu0 %v1149
        %v1275 = vpop.f32.mrf.mxu0
        %v1276 = vadd.f32 %v1169, %v1275
        %v1277 = vpop.f32.mrf.mxu0
        %v1278 = vadd.f32 %v1169, %v1277
        %1279 = vdwg.mxu0
        %v1280 = vxor.u32 %v1276, 2147483648
        %v1281 = vxor.u32 %v1278, 2147483648
        %v1282 = vmul.f32 %v1280, 1.442695
        %v1283 = vpow.pop %v1282
        %v1284 = vmul.f32 %v1281, 1.442695
        %v1285 = vpow.pop %v1284
        %v1286 = vadd.f32 %v1283, 1.0
        %v1287 = vadd.f32 %v1285, 1.0
        %v1288 = vrcp.pop %v1286
        %v1289 = vmul.f32 %v1286, %v1288
        %v1290 = vsub.f32 1.0, %v1289
        %v1291 = vmul.f32 %v1288, %v1290
        %v1292 = vadd.f32 %v1288, %v1291
        %vm1293 = vweird.f32 %v1286
        %vm1294 = vweird.f32 %v1288
        %vm1295 = vmor %vm1293, %vm1294
        %v1296 = vsel %vm1295, %v1288, %v1292
        %v1297 = vand.u32 2147483647, %v1286
        %vm1298 = vcmp.eq.f32.partialorder %v1297, 8.507059e+37
        %v1299 = vand.u32 %v1286, 2147483648
        %v1300 = vor.u32 1.1754944e-38, %v1299
        %v1301 = vsel %vm1298, %v1300, %v1296
        %v1302 = vmul.f32 1.0, %v1301
        %v1303 = vrcp.pop %v1287
        %v1304 = vmul.f32 %v1287, %v1303
        %v1305 = vsub.f32 1.0, %v1304
        %v1306 = vmul.f32 %v1303, %v1305
        %v1307 = vadd.f32 %v1303, %v1306
        %vm1308 = vweird.f32 %v1287
        %vm1309 = vweird.f32 %v1303
        %vm1310 = vmor %vm1308, %vm1309
        %v1311 = vsel %vm1310, %v1303, %v1307
        %v1312 = vand.u32 2147483647, %v1287
        %vm1313 = vcmp.eq.f32.partialorder %v1312, 8.507059e+37
        %v1314 = vand.u32 %v1287, 2147483648
        %v1315 = vor.u32 1.1754944e-38, %v1314
        %v1316 = vsel %vm1313, %v1315, %v1311
        %v1317 = vmul.f32 1.0, %v1316
        %v1318 = vmul.f32 %v1262, %v1302
        %v1319 = vmul.f32 %v1264, %v1317
        %v1320 = vadd.f32 %v1318, %v1319
        %v1321 = vrot.slane %v1320, 4
        %v1322 = vadd.f32 %v1320, %v1321
        %v1323 = vrot.slane %v1322, 2
        %v1324 = vadd.f32 %v1322, %v1323
        %v1325 = vrot.slane %v1324, 1
        %v1326 = vadd.f32 %v1324, %v1325
        %v1327 = vrcp.pop 16.0
        %v1328 = vmul.f32 16.0, %v1327
        %v1329 = vsub.f32 1.0, %v1328
        %v1330 = vmul.f32 %v1327, %v1329
        %v1331 = vadd.f32 %v1327, %v1330
        %vm1332 = vweird.f32 %v1327
        %v1333 = vsel %vm1332, %v1327, %v1331
        %v1334 = vmul.f32 %v1326, %v1333
        %v1335 = vpack.c.bf16 %v1334, %v1334
        %v1336 = vld [vmem:[#allocation9] sm:$0xff]
        %v1337 = vld [vmem:[#allocation9 + $0x8] sm:$0xff]
        %v1338 = vld [vmem:[#allocation9 + $0x10] sm:$0xff]
        %v1339 = vld [vmem:[#allocation9 + $0x18] sm:$0xff]
        %v1340 = vld [vmem:[#allocation9 + $0x20] sm:$0xff]
        %v1341 = vld [vmem:[#allocation9 + $0x28] sm:$0xff]
        %v1342 = vld [vmem:[#allocation9 + $0x30] sm:$0xff]
        %v1343 = vld [vmem:[#allocation9 + $0x38] sm:$0xff]
        %v1344 = vld [vmem:[#allocation9 + $0x40] sm:$0xff]
        %v1345 = vld [vmem:[#allocation9 + $0x48] sm:$0xff]
        %v1346 = vld [vmem:[#allocation9 + $0x50] sm:$0xff]
        %v1347 = vld [vmem:[#allocation9 + $0x58] sm:$0xff]
        %v1348 = vld [vmem:[#allocation9 + $0x60] sm:$0xff]
        %v1349 = vld [vmem:[#allocation9 + $0x68] sm:$0xff]
        %v1350 = vld [vmem:[#allocation9 + $0x70] sm:$0xff]
        %v1351 = vld [vmem:[#allocation9 + $0x78] sm:$0xff]
        %v1352 = vld [vmem:[%s8] sm:$0x3]
        %v1369 = vunpack.c.l.b16 %v1336
        %v1370 = vunpack.c.h.b16 %v1336
        %v1371 = vunpack.c.l.b16 %v1337
        %v1372 = vunpack.c.h.b16 %v1337
        %v1373 = vunpack.c.l.b16 %v1338
        %v1374 = vunpack.c.h.b16 %v1338
        %v1375 = vunpack.c.l.b16 %v1339
        %v1376 = vunpack.c.h.b16 %v1339
        %v1377 = vunpack.c.l.b16 %v1340
        %v1378 = vunpack.c.h.b16 %v1340
        %v1379 = vunpack.c.l.b16 %v1341
        %v1380 = vunpack.c.h.b16 %v1341
        %v1381 = vunpack.c.l.b16 %v1342
        %v1382 = vunpack.c.h.b16 %v1342
        %v1383 = vunpack.c.l.b16 %v1343
        %v1384 = vunpack.c.h.b16 %v1343
        %v1385 = vunpack.c.l.b16 %v1344
        %v1386 = vunpack.c.h.b16 %v1344
        %v1387 = vunpack.c.l.b16 %v1345
        %v1388 = vunpack.c.h.b16 %v1345
        %v1389 = vunpack.c.l.b16 %v1346
        %v1390 = vunpack.c.h.b16 %v1346
        %v1391 = vunpack.c.l.b16 %v1347
        %v1392 = vunpack.c.h.b16 %v1347
        %v1393 = vunpack.c.l.b16 %v1348
        %v1394 = vunpack.c.h.b16 %v1348
        %v1395 = vunpack.c.l.b16 %v1349
        %v1396 = vunpack.c.h.b16 %v1349
        %v1397 = vunpack.c.l.b16 %v1350
        %v1398 = vunpack.c.h.b16 %v1350
        %v1399 = vunpack.c.l.b16 %v1351
        %v1400 = vunpack.c.h.b16 %v1351
        %v1401 = vpack.c.b16 %v1371, %v1369
        %v1402 = vpack.c.b16 %v1372, %v1370
        %v1403 = vpack.c.b16 %v1375, %v1373
        %v1404 = vpack.c.b16 %v1376, %v1374
        %v1405 = vpack.c.b16 %v1379, %v1377
        %v1406 = vpack.c.b16 %v1380, %v1378
        %v1407 = vpack.c.b16 %v1383, %v1381
        %v1408 = vpack.c.b16 %v1384, %v1382
        %v1409 = vpack.c.b16 %v1387, %v1385
        %v1410 = vpack.c.b16 %v1388, %v1386
        %v1411 = vpack.c.b16 %v1391, %v1389
        %v1412 = vpack.c.b16 %v1392, %v1390
        %v1413 = vpack.c.b16 %v1395, %v1393
        %v1414 = vpack.c.b16 %v1396, %v1394
        %v1415 = vpack.c.b16 %v1399, %v1397
        %v1416 = vpack.c.b16 %v1400, %v1398
        %v1434 = vperm.slane %v1352, 0
        %v1435 = vperm.slane %v1352, 1
        %1438 = vmatpush.bf16.msra.mxu0 %v1415
        %1439 = vmatpush.bf16.msra.mxu0 %v1413
        %1440 = vmatpush.bf16.msra.mxu0 %v1411
        %1441 = vmatpush.bf16.msra.mxu0 %v1409
        %1442 = vmatpush.bf16.msra.mxu0 %v1407
        %1443 = vmatpush.bf16.msra.mxu0 %v1405
        %1444 = vmatpush.bf16.msra.mxu0 %v1403
        %1445 = vmatpush.bf16.msra.mxu0 %v1401
        %1446 = vmatmul.bf16.gmra.mxu0 %v1335
        %v1447 = vpop.f32.mrf.mxu0
        %v1448 = vadd.f32 %v1434, %v1447
        %v1449 = vpop.f32.mrf.mxu0
        %1450 = vdwg.mxu0
        %1451 = vmatpush.bf16.msra.mxu0 %v1416
        %1452 = vmatpush.bf16.msra.mxu0 %v1414
        %1453 = vmatpush.bf16.msra.mxu0 %v1412
        %1454 = vmatpush.bf16.msra.mxu0 %v1410
        %1455 = vmatpush.bf16.msra.mxu0 %v1408
        %1456 = vmatpush.bf16.msra.mxu0 %v1406
        %1457 = vmatpush.bf16.msra.mxu0 %v1404
        %1458 = vmatpush.bf16.msra.mxu0 %v1402
        %1459 = vmatmul.bf16.gmra.mxu0 %v1335
        %v1460 = vpop.f32.mrf.mxu0
        %v1461 = vadd.f32 %v1435, %v1460
        %v1462 = vpop.f32.mrf.mxu0
        %1463 = vdwg.mxu0
        %v1464 = vmax.f32 %v1448, 0.0
        %v1465 = vmax.f32 %v1461, 0.0
        %v1466 = vmul.f32 %v1465, 0.5
        %v1467 = vmul.f32 %v1466, 1.442695
        %v1468 = vpow.pop %v1467
        %v1469 = vld [vmem:[%s455] sm:$0x1]
        %v1470 = vmul.f32 %v1469, %v1468
        %v1471 = vadd.f32 %v1470, %v1464
        %v1475 = vrot.slane %v1464, 7
        %v1476 = vrot.slane %v1465, 6
        %vm1477 = vcmask 1040384
        %v1478 = vsel %vm1477, %v1471, %v1475
        %vm1479 = vcmask 1041408
        %v1480 = vsel %vm1479, %v1478, %v1476
        %v1482 = vlaneseq
        %vm1483 = vcmp.ge.s32.totalorder %v1482, 0
        %vm1484 = vcmp.lt.s32.totalorder %v1482, 384
        %vm1485 = vmand %vm1483, %vm1484
        %1486 = vst.msk [vmem:[%s459] sm:$0x7] %vm1485, %v1480
        %p1487 = scmp.lt.s32.totalorder %s26, 1
        %s1488 = scalar_select %p1487, %s26, 1
        %s1489 = smul.addr %s1488, 3
        %s1490 = scalar_lea.vmem %s10, %s1489
        // Predicated region
        $region81: #{convo_forward.1} parent=59 // pred_check
          %p1491 = pneg %p264
        $region82: #{convo_forward.1} parent=59 // pred_check_branch
          %1493 = sbr.rel (%p1491) target = $region84
        $region83: #{convo_forward.1} parent=59 // pred_region
          _
        $region84: #{convo_forward.1} parent=59 // pred_fallthru
          _
      $region60: #{convo_forward.1} parent=5 // pred_fallthru
        _
      %p1494 = scmp.le.s32.totalorder 2, %s21
      // Predicated region
      $region85: #{convo_forward.1} parent=5 // pred_check
        %p1495 = pneg %p1494
      $region86: #{convo_forward.1} parent=5 // pred_check_branch
        %1497 = sbr.rel (%p1495) target = $region88
      $region87: #{convo_forward.1} parent=5 // pred_region
        %s1498 = ssub.s32 %s21, 2
        // Predicated region
        $region89: #{convo_forward.1} parent=87 // pred_check
          %p1499 = pneg %p270
        $region90: #{convo_forward.1} parent=87 // pred_check_branch
          %1501 = sbr.rel (%p1499) target = $region92
        $region91: #{convo_forward.1} parent=87 // pred_region
          %p1502 = scmp.lt.s32.totalorder %s27, 1
          %s1503 = scalar_select %p1502, %s27, 1
          %s1504 = smul.addr %s1503, 3
          %s1505 = scalar_lea.vmem %s10, %s1504
        $region92: #{convo_forward.1} parent=87 // pred_fallthru
          _
      $region88: #{convo_forward.1} parent=5 // pred_fallthru
        _
    $region6: #{convo_forward.1} parent=1 // loop_footer
      %s25 = sadd.s32 1, %s21
    $region7: #{convo_forward.1} parent=1 // loop_footer_branch
      %20 = sbr.rel target = $region3
    $region8: #{convo_forward.1} parent=1 // loop_exit
      _
    %1506 = vsyncpa [#allocation3], 1
    %s1507 = scalar_lea.sflag [#allocation3], 1
    %1508 = vsyncpa %s1507, 1
    %1509 = vsyncpa [#allocation5], 1
    %1510 = vsyncpa [#allocation8], 1

</llo_original>
